<compile_context>
chip_gen: v7x
topology: tpu7x:2x2x1
jax: 0.10.0
libtpu: 0.0.40
codegen_flags: <defaults>
</compile_context>

<pallas_src>
import jax
import jax.numpy as jnp
from jax import lax
from jax.experimental import pallas as pl
from jax.experimental.pallas import tpu as pltpu


def _build_toeplitz_weights(w_oihw, W):
    """Three block-Toeplitz matrices T_kh of shape (W*Cin, W*Cout).

    T_kh[wi*Cin+ci, wo*Cout+co] = w[co, ci, kh, wi-wo+1] if 0 <= wi-wo+1 <= 2 else 0,
    so a lane-dense row-slab matmul  apad_row(h+kh) @ T_kh  realizes all kw taps of the
    3x3 conv (with 'same' width padding folded into the matrix zeros).
    """
    Cout, Cin, KH, KW = w_oihw.shape
    w_k = jnp.transpose(w_oihw, (2, 3, 1, 0))              # (kh, kw, Cin, Cout)
    mats = []
    for kh in range(KH):
        T = jnp.zeros((W * Cin, W * Cout), w_oihw.dtype)
        for kw in range(KW):
            # S[wi, wo] = 1 iff wi == wo + kw - 1
            S = jnp.eye(W, W, k=1 - kw, dtype=w_oihw.dtype)
            T = T + jnp.kron(S, w_k[kh, kw])
        mats.append(T)
    return mats


def _vmem_limit_bytes(H, WCin, WCout):
    """Explicit VMEM budget: 2x in block + 2x out block + scratch + params, with headroom."""
    f = 4
    need = (2 * H * WCin                                   # double-buffered input block
            + 2 * H * WCout                                # double-buffered output block
            + (H + 2) * WCin                               # padded-activation scratch
            + 2 * (3 * WCin * WCout + 2 * WCin + WCout)    # Toeplitz weights + scale/shift/bias
            ) * f
    try:
        cap = int(getattr(pltpu.get_tpu_info(), "vmem_capacity_bytes", 64 << 20))
    except Exception:
        cap = 64 << 20
    return int(min(max(2 * need + (8 << 20), 16 << 20), cap))


def conv_block_apply(x, gamma, beta, w_oihw, bias, eps=1e-5):
    """One conv_block: y = conv3x3(relu(bn(x))) + b.

    x: (N, H, W, Cin) float32 NHWC.  Returns y: (N, H, W, Cout) (concat done by caller).
    """
    N, H, W, Cin = x.shape
    Cout = w_oihw.shape[0]
    WCin = W * Cin
    WCout = W * Cout

    # BatchNorm batch statistics in ONE pass over x (sum and sum-of-squares fuse into a
    # single HBM read); biased variance, training-mode forward.
    cnt = N * H * W
    s1 = jnp.sum(x, axis=(0, 1, 2))
    s2 = jnp.sum(x * x, axis=(0, 1, 2))
    mean = s1 / cnt
    var = s2 / cnt - mean * mean
    scale = gamma / jnp.sqrt(var + eps)
    shift = beta - mean * scale
    scale_t = jnp.tile(scale, W).reshape(1, WCin)          # lane-dense (wi*Cin+ci) layout
    shift_t = jnp.tile(shift, W).reshape(1, WCin)
    bias_t = jnp.tile(bias, W).reshape(1, WCout)           # lane-dense (wo*Cout+co) layout

    x_dense = x.reshape(N, H, WCin)                        # contiguous -> free reshape
    t0, t1, t2 = _build_toeplitz_weights(w_oihw, W)
    # TODO(synk): for large W the (W*Cin, W*Cout) Toeplitz weights grow O(W^2); switch to a
    # pltpu.roll shift-and-accumulate path (and a row-strip grid axis with halo DMA) there.

    def kernel(x_ref, scale_ref, shift_ref, t0_ref, t1_ref, t2_ref, b_ref,
               out_ref, apad_ref):
        # BN + ReLU on the lane-dense (H, W*Cin) slab.
        xv = x_ref[0]
        a = jnp.maximum(xv * scale_ref[...] + shift_ref[...], 0.0)

        # Row-padded activation: zero halo rows, interior = a.  (Width padding is folded
        # into the Toeplitz weights, so no column halo is needed.)
        zrow = jnp.zeros((1, WCin), jnp.float32)
        apad_ref[0:1, :] = zrow
        apad_ref[H + 1:H + 2, :] = zrow
        apad_ref[1:H + 1, :] = a

        # 3x3 conv as three lane-dense MXU matmuls, one per kernel row kh.
        y = jnp.dot(apad_ref[0:H, :], t0_ref[...], preferred_element_type=jnp.float32)
        y = y + jnp.dot(apad_ref[1:H + 1, :], t1_ref[...], preferred_element_type=jnp.float32)
        y = y + jnp.dot(apad_ref[2:H + 2, :], t2_ref[...], preferred_element_type=jnp.float32)
        y = y + b_ref[...]                                  # single broadcast per step

        out_ref[0] = y.astype(out_ref.dtype)                # single whole-slab store

    y_dense = pl.pallas_call(
        kernel,
        out_shape=jax.ShapeDtypeStruct((N, H, WCout), x.dtype),
        grid=(N,),
        in_specs=[
            pl.BlockSpec((1, H, WCin), lambda n: (n, 0, 0)),
            pl.BlockSpec((1, WCin), lambda n: (0, 0)),
            pl.BlockSpec((1, WCin), lambda n: (0, 0)),
            pl.BlockSpec((WCin, WCout), lambda n: (0, 0)),
            pl.BlockSpec((WCin, WCout), lambda n: (0, 0)),
            pl.BlockSpec((WCin, WCout), lambda n: (0, 0)),
            pl.BlockSpec((1, WCout), lambda n: (0, 0)),
        ],
        out_specs=pl.BlockSpec((1, H, WCout), lambda n: (n, 0, 0)),
        scratch_shapes=[pltpu.VMEM((H + 2, WCin), jnp.float32)],
        compiler_params=pltpu.CompilerParams(
            dimension_semantics=("parallel",),
            vmem_limit_bytes=_vmem_limit_bytes(H, WCin, WCout)),
    )(x_dense, scale_t, shift_t, t0, t1, t2, bias_t)

    return y_dense.reshape(N, H, W, Cout)


def init_dense_block_params(key, num_convs, input_channels, num_channels):
    """Deterministic synthetic parameters matching the PyTorch module's shapes."""
    params = []
    for i in range(num_convs):
        cin = input_channels + i * num_channels
        key, k1, k2, k3, k4 = jax.random.split(key, 5)
        gamma = 1.0 + 0.1 * jax.random.normal(k1, (cin,), jnp.float32)
        beta = 0.1 * jax.random.normal(k2, (cin,), jnp.float32)
        w = 0.1 * jax.random.normal(k3, (num_channels, cin, 3, 3), jnp.float32)  # OIHW
        b = 0.1 * jax.random.normal(k4, (num_channels,), jnp.float32)
        params.append((gamma, beta, w, b))
    return params


def dense_block_forward(x_nchw, params):
    """DenseBlock.forward: X = cat(X, blk(X)) along channels per block.  The kernel emits
    only the new channels; the concat runs in the wrapper (full-bandwidth XLA concat)."""
    x = jnp.transpose(x_nchw, (0, 2, 3, 1))                # NCHW -> NHWC
    for (gamma, beta, w, b) in params:
        y = conv_block_apply(x, gamma, beta, w, b)
        x = jnp.concatenate([x, y], axis=-1)
    return jnp.transpose(x, (0, 3, 1, 2))                  # NHWC -> NCHW


# ------------------------- pure-JAX reference -------------------------
def _ref_conv_block(x, gamma, beta, w_oihw, bias, eps=1e-5):
    mean = jnp.mean(x, axis=(0, 1, 2))
    var = jnp.var(x, axis=(0, 1, 2))
    a = jnp.maximum((x - mean) / jnp.sqrt(var + eps) * gamma + beta, 0.0)
    w_hwio = jnp.transpose(w_oihw, (2, 3, 1, 0))
    y = lax.conv_general_dilated(a, w_hwio, (1, 1), "SAME",
                                 dimension_numbers=("NHWC", "HWIO", "NHWC"))
    return y + bias


def _ref_dense_block(x_nchw, params):
    x = jnp.transpose(x_nchw, (0, 2, 3, 1))
    for (gamma, beta, w, b) in params:
        y = _ref_conv_block(x, gamma, beta, w, b)
        x = jnp.concatenate([x, y], axis=-1)
    return jnp.transpose(x, (0, 3, 1, 2))


if __name__ == "__main__":
    key = jax.random.PRNGKey(0)
    kx, kp = jax.random.split(key)

    N, C, H, W = 2, 4, 16, 16
    num_convs, num_channels = 2, 4

    x = jax.random.normal(kx, (N, C, H, W), jnp.float32)   # NCHW like PyTorch
    params = init_dense_block_params(kp, num_convs, C, num_channels)

    out = jax.jit(dense_block_forward)(x, params)
    out = jax.block_until_ready(out)

    assert out.shape == (N, C + num_convs * num_channels, H, W), out.shape

    ref = _ref_dense_block(x, params)
    err = float(jnp.max(jnp.abs(out - ref)))
    assert jnp.allclose(out, ref, atol=1e-4, rtol=1e-4), f"max abs err {err}"

    print("KERNEL_OK")
</pallas_src>

<mosaic_0001>
module attributes {stable_mosaic.version = 11 : i64} {
  func.func @kernel(%arg0: i32, %arg1: memref<1x16x64xf32, #tpu.memory_space<vmem>>, %arg2: memref<1x64xf32, #tpu.memory_space<vmem>>, %arg3: memref<1x64xf32, #tpu.memory_space<vmem>>, %arg4: memref<64x64xf32, #tpu.memory_space<vmem>>, %arg5: memref<64x64xf32, #tpu.memory_space<vmem>>, %arg6: memref<64x64xf32, #tpu.memory_space<vmem>>, %arg7: memref<1x64xf32, #tpu.memory_space<vmem>>, %arg8: memref<1x16x64xf32, #tpu.memory_space<vmem>>, %arg9: memref<18x64xf32, #tpu.memory_space<vmem>>) attributes {dimension_semantics = [#tpu.dimension_semantics<parallel>], iteration_bounds = array<i64: 2>, scalar_prefetch = 0 : i64, scratch_operands = 1 : i64, tpu.core_type = #tpu.core_type<tc>, window_params = [{transform_indices = @transform_0, window_bounds = array<i64: 1, 16, 64>}, {pipeline_mode = #tpu.pipeline_mode<synchronous>, transform_indices = @transform_1, window_bounds = array<i64: 1, 64>}, {pipeline_mode = #tpu.pipeline_mode<synchronous>, transform_indices = @transform_2, window_bounds = array<i64: 1, 64>}, {pipeline_mode = #tpu.pipeline_mode<synchronous>, transform_indices = @transform_3, window_bounds = array<i64: 64, 64>}, {pipeline_mode = #tpu.pipeline_mode<synchronous>, transform_indices = @transform_4, window_bounds = array<i64: 64, 64>}, {pipeline_mode = #tpu.pipeline_mode<synchronous>, transform_indices = @transform_5, window_bounds = array<i64: 64, 64>}, {pipeline_mode = #tpu.pipeline_mode<synchronous>, transform_indices = @transform_6, window_bounds = array<i64: 1, 64>}, {transform_indices = @transform_7, window_bounds = array<i64: 1, 16, 64>}]} {
    %c0 = arith.constant 0 : index
    %c0_0 = arith.constant 0 : index
    %c0_1 = arith.constant 0 : index
    %0 = vector.load %arg1[%c0, %c0_0, %c0_1] : memref<1x16x64xf32, #tpu.memory_space<vmem>>, vector<1x16x64xf32>
    %1 = vector.shape_cast %0 : vector<1x16x64xf32> to vector<16x64xf32>
    %c0_2 = arith.constant 0 : index
    %c0_3 = arith.constant 0 : index
    %2 = vector.load %arg2[%c0_2, %c0_3] : memref<1x64xf32, #tpu.memory_space<vmem>>, vector<1x64xf32>
    %3 = vector.broadcast %2 : vector<1x64xf32> to vector<16x64xf32>
    %4 = arith.mulf %1, %3 : vector<16x64xf32>
    %c0_4 = arith.constant 0 : index
    %c0_5 = arith.constant 0 : index
    %5 = vector.load %arg3[%c0_4, %c0_5] : memref<1x64xf32, #tpu.memory_space<vmem>>, vector<1x64xf32>
    %6 = vector.broadcast %5 : vector<1x64xf32> to vector<16x64xf32>
    %7 = arith.addf %4, %6 : vector<16x64xf32>
    %cst = arith.constant 0.000000e+00 : f32
    %8 = vector.broadcast %cst : f32 to vector<16x64xf32>
    %9 = arith.maximumf %7, %8 : vector<16x64xf32>
    %cst_6 = arith.constant 0.000000e+00 : f32
    %10 = vector.broadcast %cst_6 : f32 to vector<1x64xf32>
    %c0_7 = arith.constant 0 : index
    %c0_8 = arith.constant 0 : index
    %11 = vector.load %arg9[%c0_7, %c0_8] : memref<18x64xf32, #tpu.memory_space<vmem>>, vector<1x64xf32>
    tpu.vector_store %arg9[%c0_7, %c0_8], %10 {strides = array<i32>} : memref<18x64xf32, #tpu.memory_space<vmem>>, vector<1x64xf32>,
    %c17 = arith.constant 17 : index
    %c0_9 = arith.constant 0 : index
    %12 = vector.load %arg9[%c17, %c0_9] : memref<18x64xf32, #tpu.memory_space<vmem>>, vector<1x64xf32>
    tpu.vector_store %arg9[%c17, %c0_9], %10 {strides = array<i32>} : memref<18x64xf32, #tpu.memory_space<vmem>>, vector<1x64xf32>,
    %c1 = arith.constant 1 : index
    %c0_10 = arith.constant 0 : index
    %13 = vector.load %arg9[%c1, %c0_10] : memref<18x64xf32, #tpu.memory_space<vmem>>, vector<16x64xf32>
    tpu.vector_store %arg9[%c1, %c0_10], %9 {strides = array<i32>} : memref<18x64xf32, #tpu.memory_space<vmem>>, vector<16x64xf32>,
    %c0_11 = arith.constant 0 : index
    %c0_12 = arith.constant 0 : index
    %14 = vector.load %arg9[%c0_11, %c0_12] : memref<18x64xf32, #tpu.memory_space<vmem>>, vector<16x64xf32>
    %c0_13 = arith.constant 0 : index
    %c0_14 = arith.constant 0 : index
    %15 = vector.load %arg4[%c0_13, %c0_14] : memref<64x64xf32, #tpu.memory_space<vmem>>, vector<64x64xf32>
    %cst_15 = arith.constant dense<0.000000e+00> : vector<16x64xf32>
    %16 = tpu.matmul %14, %15, %cst_15 {dimension_numbers = #tpu.dot_dimension_numbers<[1], [0], [0], [1], [0, 0, 1, 1], [], []>} : vector<16x64xf32>, vector<64x64xf32>, vector<16x64xf32> -> vector<16x64xf32>
    %c1_16 = arith.constant 1 : index
    %c0_17 = arith.constant 0 : index
    %17 = vector.load %arg9[%c1_16, %c0_17] : memref<18x64xf32, #tpu.memory_space<vmem>>, vector<16x64xf32>
    %c0_18 = arith.constant 0 : index
    %c0_19 = arith.constant 0 : index
    %18 = vector.load %arg5[%c0_18, %c0_19] : memref<64x64xf32, #tpu.memory_space<vmem>>, vector<64x64xf32>
    %cst_20 = arith.constant dense<0.000000e+00> : vector<16x64xf32>
    %19 = tpu.matmul %17, %18, %cst_20 {dimension_numbers = #tpu.dot_dimension_numbers<[1], [0], [0], [1], [0, 0, 1, 1], [], []>} : vector<16x64xf32>, vector<64x64xf32>, vector<16x64xf32> -> vector<16x64xf32>
    %20 = arith.addf %16, %19 : vector<16x64xf32>
    %c2 = arith.constant 2 : index
    %c0_21 = arith.constant 0 : index
    %21 = vector.load %arg9[%c2, %c0_21] : memref<18x64xf32, #tpu.memory_space<vmem>>, vector<16x64xf32>
    %c0_22 = arith.constant 0 : index
    %c0_23 = arith.constant 0 : index
    %22 = vector.load %arg6[%c0_22, %c0_23] : memref<64x64xf32, #tpu.memory_space<vmem>>, vector<64x64xf32>
    %cst_24 = arith.constant dense<0.000000e+00> : vector<16x64xf32>
    %23 = tpu.matmul %21, %22, %cst_24 {dimension_numbers = #tpu.dot_dimension_numbers<[1], [0], [0], [1], [0, 0, 1, 1], [], []>} : vector<16x64xf32>, vector<64x64xf32>, vector<16x64xf32> -> vector<16x64xf32>
    %24 = arith.addf %20, %23 : vector<16x64xf32>
    %c0_25 = arith.constant 0 : index
    %c0_26 = arith.constant 0 : index
    %25 = vector.load %arg7[%c0_25, %c0_26] : memref<1x64xf32, #tpu.memory_space<vmem>>, vector<1x64xf32>
    %26 = vector.broadcast %25 : vector<1x64xf32> to vector<16x64xf32>
    %27 = arith.addf %24, %26 : vector<16x64xf32>
    %c0_27 = arith.constant 0 : index
    %c0_28 = arith.constant 0 : index
    %c0_29 = arith.constant 0 : index
    %28 = vector.load %arg8[%c0_27, %c0_28, %c0_29] : memref<1x16x64xf32, #tpu.memory_space<vmem>>, vector<1x16x64xf32>
    %29 = vector.shape_cast %28 : vector<1x16x64xf32> to vector<16x64xf32>
    %30 = vector.shape_cast %27 : vector<16x64xf32> to vector<1x16x64xf32>
    tpu.vector_store %arg8[%c0_27, %c0_28, %c0_29], %30 {strides = array<i32>} : memref<1x16x64xf32, #tpu.memory_space<vmem>>, vector<1x16x64xf32>,
    return
  }
  func.func @transform_0(%arg0: i32) -> (i32, i32, i32) {
    %c0_i32 = arith.constant 0 : i32
    %c0_i32_0 = arith.constant 0 : i32
    %c0_i32_1 = arith.constant 0 : i32
    return %arg0, %c0_i32, %c0_i32_0 : i32, i32, i32
  }
  func.func @transform_1(%arg0: i32) -> (i32, i32) {
    %c0_i32 = arith.constant 0 : i32
    %c0_i32_0 = arith.constant 0 : i32
    %c0_i32_1 = arith.constant 0 : i32
    return %c0_i32, %c0_i32_0 : i32, i32
  }
  func.func @transform_2(%arg0: i32) -> (i32, i32) {
    %c0_i32 = arith.constant 0 : i32
    %c0_i32_0 = arith.constant 0 : i32
    %c0_i32_1 = arith.constant 0 : i32
    return %c0_i32, %c0_i32_0 : i32, i32
  }
  func.func @transform_3(%arg0: i32) -> (i32, i32) {
    %c0_i32 = arith.constant 0 : i32
    %c0_i32_0 = arith.constant 0 : i32
    %c0_i32_1 = arith.constant 0 : i32
    return %c0_i32, %c0_i32_0 : i32, i32
  }
  func.func @transform_4(%arg0: i32) -> (i32, i32) {
    %c0_i32 = arith.constant 0 : i32
    %c0_i32_0 = arith.constant 0 : i32
    %c0_i32_1 = arith.constant 0 : i32
    return %c0_i32, %c0_i32_0 : i32, i32
  }
  func.func @transform_5(%arg0: i32) -> (i32, i32) {
    %c0_i32 = arith.constant 0 : i32
    %c0_i32_0 = arith.constant 0 : i32
    %c0_i32_1 = arith.constant 0 : i32
    return %c0_i32, %c0_i32_0 : i32, i32
  }
  func.func @transform_6(%arg0: i32) -> (i32, i32) {
    %c0_i32 = arith.constant 0 : i32
    %c0_i32_0 = arith.constant 0 : i32
    %c0_i32_1 = arith.constant 0 : i32
    return %c0_i32, %c0_i32_0 : i32, i32
  }
  func.func @transform_7(%arg0: i32) -> (i32, i32, i32) {
    %c0_i32 = arith.constant 0 : i32
    %c0_i32_0 = arith.constant 0 : i32
    %c0_i32_1 = arith.constant 0 : i32
    return %arg0, %c0_i32, %c0_i32_0 : i32, i32, i32
  }
}

module attributes {stable_mosaic.version = 11 : i64} {
  func.func @kernel(%arg0: i32, %arg1: memref<1x16x128xf32, #tpu.memory_space<vmem>>, %arg2: memref<1x128xf32, #tpu.memory_space<vmem>>, %arg3: memref<1x128xf32, #tpu.memory_space<vmem>>, %arg4: memref<128x64xf32, #tpu.memory_space<vmem>>, %arg5: memref<128x64xf32, #tpu.memory_space<vmem>>, %arg6: memref<128x64xf32, #tpu.memory_space<vmem>>, %arg7: memref<1x64xf32, #tpu.memory_space<vmem>>, %arg8: memref<1x16x64xf32, #tpu.memory_space<vmem>>, %arg9: memref<18x128xf32, #tpu.memory_space<vmem>>) attributes {dimension_semantics = [#tpu.dimension_semantics<parallel>], iteration_bounds = array<i64: 2>, scalar_prefetch = 0 : i64, scratch_operands = 1 : i64, tpu.core_type = #tpu.core_type<tc>, window_params = [{transform_indices = @transform_0, window_bounds = array<i64: 1, 16, 128>}, {pipeline_mode = #tpu.pipeline_mode<synchronous>, transform_indices = @transform_1, window_bounds = array<i64: 1, 128>}, {pipeline_mode = #tpu.pipeline_mode<synchronous>, transform_indices = @transform_2, window_bounds = array<i64: 1, 128>}, {pipeline_mode = #tpu.pipeline_mode<synchronous>, transform_indices = @transform_3, window_bounds = array<i64: 128, 64>}, {pipeline_mode = #tpu.pipeline_mode<synchronous>, transform_indices = @transform_4, window_bounds = array<i64: 128, 64>}, {pipeline_mode = #tpu.pipeline_mode<synchronous>, transform_indices = @transform_5, window_bounds = array<i64: 128, 64>}, {pipeline_mode = #tpu.pipeline_mode<synchronous>, transform_indices = @transform_6, window_bounds = array<i64: 1, 64>}, {transform_indices = @transform_7, window_bounds = array<i64: 1, 16, 64>}]} {
    %c0 = arith.constant 0 : index
    %c0_0 = arith.constant 0 : index
    %c0_1 = arith.constant 0 : index
    %0 = vector.load %arg1[%c0, %c0_0, %c0_1] : memref<1x16x128xf32, #tpu.memory_space<vmem>>, vector<1x16x128xf32>
    %1 = vector.shape_cast %0 : vector<1x16x128xf32> to vector<16x128xf32>
    %c0_2 = arith.constant 0 : index
    %c0_3 = arith.constant 0 : index
    %2 = vector.load %arg2[%c0_2, %c0_3] : memref<1x128xf32, #tpu.memory_space<vmem>>, vector<1x128xf32>
    %3 = vector.broadcast %2 : vector<1x128xf32> to vector<16x128xf32>
    %4 = arith.mulf %1, %3 : vector<16x128xf32>
    %c0_4 = arith.constant 0 : index
    %c0_5 = arith.constant 0 : index
    %5 = vector.load %arg3[%c0_4, %c0_5] : memref<1x128xf32, #tpu.memory_space<vmem>>, vector<1x128xf32>
    %6 = vector.broadcast %5 : vector<1x128xf32> to vector<16x128xf32>
    %7 = arith.addf %4, %6 : vector<16x128xf32>
    %cst = arith.constant 0.000000e+00 : f32
    %8 = vector.broadcast %cst : f32 to vector<16x128xf32>
    %9 = arith.maximumf %7, %8 : vector<16x128xf32>
    %cst_6 = arith.constant 0.000000e+00 : f32
    %10 = vector.broadcast %cst_6 : f32 to vector<1x128xf32>
    %c0_7 = arith.constant 0 : index
    %c0_8 = arith.constant 0 : index
    %11 = vector.load %arg9[%c0_7, %c0_8] : memref<18x128xf32, #tpu.memory_space<vmem>>, vector<1x128xf32>
    tpu.vector_store %arg9[%c0_7, %c0_8], %10 {strides = array<i32>} : memref<18x128xf32, #tpu.memory_space<vmem>>, vector<1x128xf32>,
    %c17 = arith.constant 17 : index
    %c0_9 = arith.constant 0 : index
    %12 = vector.load %arg9[%c17, %c0_9] : memref<18x128xf32, #tpu.memory_space<vmem>>, vector<1x128xf32>
    tpu.vector_store %arg9[%c17, %c0_9], %10 {strides = array<i32>} : memref<18x128xf32, #tpu.memory_space<vmem>>, vector<1x128xf32>,
    %c1 = arith.constant 1 : index
    %c0_10 = arith.constant 0 : index
    %13 = vector.load %arg9[%c1, %c0_10] : memref<18x128xf32, #tpu.memory_space<vmem>>, vector<16x128xf32>
    tpu.vector_store %arg9[%c1, %c0_10], %9 {strides = array<i32>} : memref<18x128xf32, #tpu.memory_space<vmem>>, vector<16x128xf32>,
    %c0_11 = arith.constant 0 : index
    %c0_12 = arith.constant 0 : index
    %14 = vector.load %arg9[%c0_11, %c0_12] : memref<18x128xf32, #tpu.memory_space<vmem>>, vector<16x128xf32>
    %c0_13 = arith.constant 0 : index
    %c0_14 = arith.constant 0 : index
    %15 = vector.load %arg4[%c0_13, %c0_14] : memref<128x64xf32, #tpu.memory_space<vmem>>, vector<128x64xf32>
    %cst_15 = arith.constant dense<0.000000e+00> : vector<16x64xf32>
    %16 = tpu.matmul %14, %15, %cst_15 {dimension_numbers = #tpu.dot_dimension_numbers<[1], [0], [0], [1], [0, 0, 1, 1], [], []>} : vector<16x128xf32>, vector<128x64xf32>, vector<16x64xf32> -> vector<16x64xf32>
    %c1_16 = arith.constant 1 : index
    %c0_17 = arith.constant 0 : index
    %17 = vector.load %arg9[%c1_16, %c0_17] : memref<18x128xf32, #tpu.memory_space<vmem>>, vector<16x128xf32>
    %c0_18 = arith.constant 0 : index
    %c0_19 = arith.constant 0 : index
    %18 = vector.load %arg5[%c0_18, %c0_19] : memref<128x64xf32, #tpu.memory_space<vmem>>, vector<128x64xf32>
    %cst_20 = arith.constant dense<0.000000e+00> : vector<16x64xf32>
    %19 = tpu.matmul %17, %18, %cst_20 {dimension_numbers = #tpu.dot_dimension_numbers<[1], [0], [0], [1], [0, 0, 1, 1], [], []>} : vector<16x128xf32>, vector<128x64xf32>, vector<16x64xf32> -> vector<16x64xf32>
    %20 = arith.addf %16, %19 : vector<16x64xf32>
    %c2 = arith.constant 2 : index
    %c0_21 = arith.constant 0 : index
    %21 = vector.load %arg9[%c2, %c0_21] : memref<18x128xf32, #tpu.memory_space<vmem>>, vector<16x128xf32>
    %c0_22 = arith.constant 0 : index
    %c0_23 = arith.constant 0 : index
    %22 = vector.load %arg6[%c0_22, %c0_23] : memref<128x64xf32, #tpu.memory_space<vmem>>, vector<128x64xf32>
    %cst_24 = arith.constant dense<0.000000e+00> : vector<16x64xf32>
    %23 = tpu.matmul %21, %22, %cst_24 {dimension_numbers = #tpu.dot_dimension_numbers<[1], [0], [0], [1], [0, 0, 1, 1], [], []>} : vector<16x128xf32>, vector<128x64xf32>, vector<16x64xf32> -> vector<16x64xf32>
    %24 = arith.addf %20, %23 : vector<16x64xf32>
    %c0_25 = arith.constant 0 : index
    %c0_26 = arith.constant 0 : index
    %25 = vector.load %arg7[%c0_25, %c0_26] : memref<1x64xf32, #tpu.memory_space<vmem>>, vector<1x64xf32>
    %26 = vector.broadcast %25 : vector<1x64xf32> to vector<16x64xf32>
    %27 = arith.addf %24, %26 : vector<16x64xf32>
    %c0_27 = arith.constant 0 : index
    %c0_28 = arith.constant 0 : index
    %c0_29 = arith.constant 0 : index
    %28 = vector.load %arg8[%c0_27, %c0_28, %c0_29] : memref<1x16x64xf32, #tpu.memory_space<vmem>>, vector<1x16x64xf32>
    %29 = vector.shape_cast %28 : vector<1x16x64xf32> to vector<16x64xf32>
    %30 = vector.shape_cast %27 : vector<16x64xf32> to vector<1x16x64xf32>
    tpu.vector_store %arg8[%c0_27, %c0_28, %c0_29], %30 {strides = array<i32>} : memref<1x16x64xf32, #tpu.memory_space<vmem>>, vector<1x16x64xf32>,
    return
  }
  func.func @transform_0(%arg0: i32) -> (i32, i32, i32) {
    %c0_i32 = arith.constant 0 : i32
    %c0_i32_0 = arith.constant 0 : i32
    %c0_i32_1 = arith.constant 0 : i32
    return %arg0, %c0_i32, %c0_i32_0 : i32, i32, i32
  }
  func.func @transform_1(%arg0: i32) -> (i32, i32) {
    %c0_i32 = arith.constant 0 : i32
    %c0_i32_0 = arith.constant 0 : i32
    %c0_i32_1 = arith.constant 0 : i32
    return %c0_i32, %c0_i32_0 : i32, i32
  }
  func.func @transform_2(%arg0: i32) -> (i32, i32) {
    %c0_i32 = arith.constant 0 : i32
    %c0_i32_0 = arith.constant 0 : i32
    %c0_i32_1 = arith.constant 0 : i32
    return %c0_i32, %c0_i32_0 : i32, i32
  }
  func.func @transform_3(%arg0: i32) -> (i32, i32) {
    %c0_i32 = arith.constant 0 : i32
    %c0_i32_0 = arith.constant 0 : i32
    %c0_i32_1 = arith.constant 0 : i32
    return %c0_i32, %c0_i32_0 : i32, i32
  }
  func.func @transform_4(%arg0: i32) -> (i32, i32) {
    %c0_i32 = arith.constant 0 : i32
    %c0_i32_0 = arith.constant 0 : i32
    %c0_i32_1 = arith.constant 0 : i32
    return %c0_i32, %c0_i32_0 : i32, i32
  }
  func.func @transform_5(%arg0: i32) -> (i32, i32) {
    %c0_i32 = arith.constant 0 : i32
    %c0_i32_0 = arith.constant 0 : i32
    %c0_i32_1 = arith.constant 0 : i32
    return %c0_i32, %c0_i32_0 : i32, i32
  }
  func.func @transform_6(%arg0: i32) -> (i32, i32) {
    %c0_i32 = arith.constant 0 : i32
    %c0_i32_0 = arith.constant 0 : i32
    %c0_i32_1 = arith.constant 0 : i32
    return %c0_i32, %c0_i32_0 : i32, i32
  }
  func.func @transform_7(%arg0: i32) -> (i32, i32, i32) {
    %c0_i32 = arith.constant 0 : i32
    %c0_i32_0 = arith.constant 0 : i32
    %c0_i32_1 = arith.constant 0 : i32
    return %arg0, %c0_i32, %c0_i32_0 : i32, i32, i32
  }
}

</mosaic_0001>

<llo_original>
// kernel: tile.33
$region0: #{tile.33}
  #allocation0 [shape = 's32[1]{0}', space=sflag, size = 0x4, scoped, tag = 'scoped memory for tile.33']
  %s0 = inlined_call_operand.vmem [shape: f32[4], index: 0, kind: input, shape index: {}]
  %s1 = inlined_call_operand.vmem [shape: f32[16,4], index: 1, kind: output, shape index: {}]
  // Predicated region
  $region2: #{tile.33} parent=0 // pred_check
    _
  $region3: #{tile.33} parent=0 // pred_check_branch
    %3 = sbr.rel (0) target = $region5
  $region4: #{tile.33} parent=0 // pred_region
    _
  $region5: #{tile.33} parent=0 // pred_fallthru
    _
  %v4 = vld [vmem:[%s0] ss:$0 sm:$0xff]
  %5 = vst [vmem:[%s1] sm:$0xff] %v4
  %s6 = scalar_lea.vmem %s1, 8
  %7 = vst [vmem:[%s6] sm:$0xff] %v4

// kernel: tile.34
$region0: #{tile.34}
  %s0 = inlined_call_operand.vmem [shape: f32[16,4], index: 0, kind: input, shape index: {}]
  %s1 = inlined_call_operand.vmem [shape: f32[1,64], index: 1, kind: output, shape index: {}]
  $region1: #{tile.34} parent=0
    #allocation0 [shape = 'u8[4096]{0}', space=vmem, size = 0x1000, scoped, tag = 'scoped mem for output reshape']
    %v2 = vld [vmem:[%s0] sm:$0x1]
    %vm3 = vcmask 31744
    %4 = vst.msk [vmem:[#allocation0] sm:$0x1] %vm3, %v2
    %s5 = scalar_lea.vmem %s0, 15
    %v6 = vld [vmem:[%s5] sm:$0x1]
    %7 = vrot.lane.b32.xlu0 %v6, 60
    %v8 = vpop.permute.xlu0 %7
    %vm9 = vcmask 523744
    %10 = vst.msk [vmem:[#allocation0] sm:$0x1] %vm9, %v8
    %s11 = scalar_lea.vmem %s0, 14
    %v12 = vld [vmem:[%s11] sm:$0x1]
    %13 = vrot.lane.b32.xlu0 %v12, 56
    %v14 = vpop.permute.xlu0 %13
    %vm15 = vcmask 490944
    %16 = vst.msk [vmem:[#allocation0] sm:$0x1] %vm15, %v14
    %s17 = scalar_lea.vmem %s0, 13
    %v18 = vld [vmem:[%s17] sm:$0x1]
    %19 = vrot.lane.b32.xlu0 %v18, 52
    %v20 = vpop.permute.xlu0 %19
    %vm21 = vcmask 458144
    %22 = vst.msk [vmem:[#allocation0] sm:$0x1] %vm21, %v20
    %s23 = scalar_lea.vmem %s0, 12
    %v24 = vld [vmem:[%s23] sm:$0x1]
    %25 = vrot.lane.b32.xlu0 %v24, 48
    %v26 = vpop.permute.xlu0 %25
    %vm27 = vcmask 425344
    %28 = vst.msk [vmem:[#allocation0] sm:$0x1] %vm27, %v26
    %s29 = scalar_lea.vmem %s0, 11
    %v30 = vld [vmem:[%s29] sm:$0x1]
    %31 = vrot.lane.b32.xlu0 %v30, 44
    %v32 = vpop.permute.xlu0 %31
    %vm33 = vcmask 392544
    %34 = vst.msk [vmem:[#allocation0] sm:$0x1] %vm33, %v32
    %s35 = scalar_lea.vmem %s0, 10
    %v36 = vld [vmem:[%s35] sm:$0x1]
    %37 = vrot.lane.b32.xlu0 %v36, 40
    %v38 = vpop.permute.xlu0 %37
    %vm39 = vcmask 359744
    %40 = vst.msk [vmem:[#allocation0] sm:$0x1] %vm39, %v38
    %s41 = scalar_lea.vmem %s0, 9
    %v42 = vld [vmem:[%s41] sm:$0x1]
    %43 = vrot.lane.b32.xlu0 %v42, 36
    %v44 = vpop.permute.xlu0 %43
    %vm45 = vcmask 326944
    %46 = vst.msk [vmem:[#allocation0] sm:$0x1] %vm45, %v44
    %s47 = scalar_lea.vmem %s0, 8
    %v48 = vld [vmem:[%s47] sm:$0x1]
    %49 = vrot.lane.b32.xlu0 %v48, 32
    %v50 = vpop.permute.xlu0 %49
    %vm51 = vcmask 294144
    %52 = vst.msk [vmem:[#allocation0] sm:$0x1] %vm51, %v50
    %s53 = scalar_lea.vmem %s0, 7
    %v54 = vld [vmem:[%s53] sm:$0x1]
    %55 = vrot.lane.b32.xlu0 %v54, 28
    %v56 = vpop.permute.xlu0 %55
    %vm57 = vcmask 261344
    %58 = vst.msk [vmem:[#allocation0] sm:$0x1] %vm57, %v56
    %s59 = scalar_lea.vmem %s0, 6
    %v60 = vld [vmem:[%s59] sm:$0x1]
    %61 = vrot.lane.b32.xlu0 %v60, 24
    %v62 = vpop.permute.xlu0 %61
    %vm63 = vcmask 228544
    %64 = vst.msk [vmem:[#allocation0] sm:$0x1] %vm63, %v62
    %s65 = scalar_lea.vmem %s0, 5
    %v66 = vld [vmem:[%s65] sm:$0x1]
    %67 = vrot.lane.b32.xlu0 %v66, 20
    %v68 = vpop.permute.xlu0 %67
    %vm69 = vcmask 195744
    %70 = vst.msk [vmem:[#allocation0] sm:$0x1] %vm69, %v68
    %s71 = scalar_lea.vmem %s0, 4
    %v72 = vld [vmem:[%s71] sm:$0x1]
    %73 = vrot.lane.b32.xlu0 %v72, 16
    %v74 = vpop.permute.xlu0 %73
    %vm75 = vcmask 162944
    %76 = vst.msk [vmem:[#allocation0] sm:$0x1] %vm75, %v74
    %s77 = scalar_lea.vmem %s0, 3
    %v78 = vld [vmem:[%s77] sm:$0x1]
    %79 = vrot.lane.b32.xlu0 %v78, 12
    %v80 = vpop.permute.xlu0 %79
    %vm81 = vcmask 130144
    %82 = vst.msk [vmem:[#allocation0] sm:$0x1] %vm81, %v80
    %s83 = scalar_lea.vmem %s0, 2
    %v84 = vld [vmem:[%s83] sm:$0x1]
    %85 = vrot.lane.b32.xlu0 %v84, 8
    %v86 = vpop.permute.xlu0 %85
    %vm87 = vcmask 97344
    %88 = vst.msk [vmem:[#allocation0] sm:$0x1] %vm87, %v86
    %s89 = scalar_lea.vmem %s0, 1
    %v90 = vld [vmem:[%s89] sm:$0x1]
    %91 = vrot.lane.b32.xlu0 %v90, 4
    %v92 = vpop.permute.xlu0 %91
    %vm93 = vcmask 64544
    %94 = vst.msk [vmem:[#allocation0] sm:$0x1] %vm93, %v92
    %s96 = sshllo.u32 0, 1
    %v98 = vld [vmem:[#allocation0] sm:%s96]
    %s99 = sshllo.u32 0, 1
    %100 = vst [vmem:[%s1] sm:%s99] %v98

// kernel: tile.48
$region0: #{tile.48}
  #allocation0 [shape = 's32[1]{0}', space=sflag, size = 0x4, scoped, tag = 'scoped memory for tile.48']
  %s0 = inlined_call_operand.vmem [shape: f32[8], index: 0, kind: input, shape index: {}]
  %s1 = inlined_call_operand.vmem [shape: f32[16,8], index: 1, kind: output, shape index: {}]
  // Predicated region
  $region2: #{tile.48} parent=0 // pred_check
    _
  $region3: #{tile.48} parent=0 // pred_check_branch
    %3 = sbr.rel (0) target = $region5
  $region4: #{tile.48} parent=0 // pred_region
    _
  $region5: #{tile.48} parent=0 // pred_fallthru
    _
  %v4 = vld [vmem:[%s0] ss:$0 sm:$0xff]
  %5 = vst [vmem:[%s1] sm:$0xff] %v4
  %s6 = scalar_lea.vmem %s1, 8
  %7 = vst [vmem:[%s6] sm:$0xff] %v4

// kernel: tile.49
$region0: #{tile.49}
  %s0 = inlined_call_operand.vmem [shape: f32[16,8], index: 0, kind: input, shape index: {}]
  %s1 = inlined_call_operand.vmem [shape: f32[1,128], index: 1, kind: output, shape index: {}]
  $region1: #{tile.49} parent=0
    #allocation0 [shape = 'u8[4096]{0}', space=vmem, size = 0x1000, scoped, tag = 'scoped mem for output reshape']
    %v2 = vld [vmem:[%s0] sm:$0x1]
    %vm3 = vcmask 64512
    %4 = vst.msk [vmem:[#allocation0] sm:$0x1] %vm3, %v2
    %s5 = scalar_lea.vmem %s0, 15
    %v6 = vld [vmem:[%s5] sm:$0x1]
    %7 = vrot.lane.b32.xlu0 %v6, 120
    %v8 = vpop.permute.xlu0 %7
    %vm9 = vcmask 1048512
    %10 = vst.msk [vmem:[#allocation0] sm:$0x1] %vm9, %v8
    %s11 = scalar_lea.vmem %s0, 14
    %v12 = vld [vmem:[%s11] sm:$0x1]
    %13 = vrot.lane.b32.xlu0 %v12, 112
    %v14 = vpop.permute.xlu0 %13
    %vm15 = vcmask 982912
    %16 = vst.msk [vmem:[#allocation0] sm:$0x1] %vm15, %v14
    %s17 = scalar_lea.vmem %s0, 13
    %v18 = vld [vmem:[%s17] sm:$0x1]
    %19 = vrot.lane.b32.xlu0 %v18, 104
    %v20 = vpop.permute.xlu0 %19
    %vm21 = vcmask 917312
    %22 = vst.msk [vmem:[#allocation0] sm:$0x1] %vm21, %v20
    %s23 = scalar_lea.vmem %s0, 12
    %v24 = vld [vmem:[%s23] sm:$0x1]
    %25 = vrot.lane.b32.xlu0 %v24, 96
    %v26 = vpop.permute.xlu0 %25
    %vm27 = vcmask 851712
    %28 = vst.msk [vmem:[#allocation0] sm:$0x1] %vm27, %v26
    %s29 = scalar_lea.vmem %s0, 11
    %v30 = vld [vmem:[%s29] sm:$0x1]
    %31 = vrot.lane.b32.xlu0 %v30, 88
    %v32 = vpop.permute.xlu0 %31
    %vm33 = vcmask 786112
    %34 = vst.msk [vmem:[#allocation0] sm:$0x1] %vm33, %v32
    %s35 = scalar_lea.vmem %s0, 10
    %v36 = vld [vmem:[%s35] sm:$0x1]
    %37 = vrot.lane.b32.xlu0 %v36, 80
    %v38 = vpop.permute.xlu0 %37
    %vm39 = vcmask 720512
    %40 = vst.msk [vmem:[#allocation0] sm:$0x1] %vm39, %v38
    %s41 = scalar_lea.vmem %s0, 9
    %v42 = vld [vmem:[%s41] sm:$0x1]
    %43 = vrot.lane.b32.xlu0 %v42, 72
    %v44 = vpop.permute.xlu0 %43
    %vm45 = vcmask 654912
    %46 = vst.msk [vmem:[#allocation0] sm:$0x1] %vm45, %v44
    %s47 = scalar_lea.vmem %s0, 8
    %v48 = vld [vmem:[%s47] sm:$0x1]
    %49 = vrot.lane.b32.xlu0 %v48, 64
    %v50 = vpop.permute.xlu0 %49
    %vm51 = vcmask 589312
    %52 = vst.msk [vmem:[#allocation0] sm:$0x1] %vm51, %v50
    %s53 = scalar_lea.vmem %s0, 7
    %v54 = vld [vmem:[%s53] sm:$0x1]
    %55 = vrot.lane.b32.xlu0 %v54, 56
    %v56 = vpop.permute.xlu0 %55
    %vm57 = vcmask 523712
    %58 = vst.msk [vmem:[#allocation0] sm:$0x1] %vm57, %v56
    %s59 = scalar_lea.vmem %s0, 6
    %v60 = vld [vmem:[%s59] sm:$0x1]
    %61 = vrot.lane.b32.xlu0 %v60, 48
    %v62 = vpop.permute.xlu0 %61
    %vm63 = vcmask 458112
    %64 = vst.msk [vmem:[#allocation0] sm:$0x1] %vm63, %v62
    %s65 = scalar_lea.vmem %s0, 5
    %v66 = vld [vmem:[%s65] sm:$0x1]
    %67 = vrot.lane.b32.xlu0 %v66, 40
    %v68 = vpop.permute.xlu0 %67
    %vm69 = vcmask 392512
    %70 = vst.msk [vmem:[#allocation0] sm:$0x1] %vm69, %v68
    %s71 = scalar_lea.vmem %s0, 4
    %v72 = vld [vmem:[%s71] sm:$0x1]
    %73 = vrot.lane.b32.xlu0 %v72, 32
    %v74 = vpop.permute.xlu0 %73
    %vm75 = vcmask 326912
    %76 = vst.msk [vmem:[#allocation0] sm:$0x1] %vm75, %v74
    %s77 = scalar_lea.vmem %s0, 3
    %v78 = vld [vmem:[%s77] sm:$0x1]
    %79 = vrot.lane.b32.xlu0 %v78, 24
    %v80 = vpop.permute.xlu0 %79
    %vm81 = vcmask 261312
    %82 = vst.msk [vmem:[#allocation0] sm:$0x1] %vm81, %v80
    %s83 = scalar_lea.vmem %s0, 2
    %v84 = vld [vmem:[%s83] sm:$0x1]
    %85 = vrot.lane.b32.xlu0 %v84, 16
    %v86 = vpop.permute.xlu0 %85
    %vm87 = vcmask 195712
    %88 = vst.msk [vmem:[#allocation0] sm:$0x1] %vm87, %v86
    %s89 = scalar_lea.vmem %s0, 1
    %v90 = vld [vmem:[%s89] sm:$0x1]
    %91 = vrot.lane.b32.xlu0 %v90, 8
    %v92 = vpop.permute.xlu0 %91
    %vm93 = vcmask 130112
    %94 = vst.msk [vmem:[#allocation0] sm:$0x1] %vm93, %v92
    %s96 = sshllo.u32 0, 1
    %v98 = vld [vmem:[#allocation0] sm:%s96]
    %s99 = sshllo.u32 0, 1
    %100 = vst [vmem:[%s1] sm:%s99] %v98

// kernel: dense_block_forward.2
$region0: #{dense_block_forward.2}
  #allocation0 [shape = 'u32[]', space=smem, size = 0x4, offset = 0x4, fixed_abs, tag = 'smem constant byte address 0x4 - core index']
  #allocation1 [shape = 'u32[144,128]{1,0:T(1,128)}', space=vmem, size = 0x12000, scoped, tag = 'internal scratch']
  #allocation2 [shape = 'f32[18,64]{1,0:T(8,128)}', space=vmem, size = 0x3000, scoped, tag = 'scratch operand']
  %s0 = inlined_call_operand.vmem [shape: f32[2,16,64], index: 0, kind: input, shape index: {}]
  %s1 = inlined_call_operand.vmem [shape: f32[1,64], index: 1, kind: input, shape index: {}]
  %s2 = inlined_call_operand.vmem [shape: f32[1,64], index: 2, kind: input, shape index: {}]
  %s3 = inlined_call_operand.vmem [shape: f32[64,64], index: 3, kind: input, shape index: {}]
  %s4 = inlined_call_operand.vmem [shape: f32[64,64], index: 4, kind: input, shape index: {}]
  %s5 = inlined_call_operand.vmem [shape: f32[64,64], index: 5, kind: input, shape index: {}]
  %s6 = inlined_call_operand.vmem [shape: f32[1,64], index: 6, kind: input, shape index: {}]
  %s7 = inlined_call_operand.vmem [shape: f32[2,16,64], index: 7, kind: output, shape index: {}]
  %s8 = sld [smem:[#allocation0]]
  $region61: #{dense_block_forward.2} parent=0
    _
  %s10 = ssub.s32 1, %s8
  %s11 = scalar_select 0, %s10, %s8
  loop: start=0, step=1, limit=4
  $region2: #{dense_block_forward.2} parent=0 // loop_pre_header
    _
  $region3: #{dense_block_forward.2} parent=0 // loop_header
    %s13 = sphi 0, %s17
    %p14 = scmp.ge.s32.totalorder %s13, 4
    %s23 = sphi 0, %s25
    %s26 = sphi 0, %s23
    %s27 = sphi 0, %s26
    %s43 = sphi 0, %s27
    %s47 = sphi 0, %s47
    %s49 = sphi 0, %s47
    %s50 = sphi 0, %s49
    %s64 = sphi 0, %s50
    %s68 = sphi 0, %s68
    %s70 = sphi 0, %s68
    %s71 = sphi 0, %s70
    %s85 = sphi 0, %s71
    %s89 = sphi 0, %s89
    %s91 = sphi 0, %s89
    %s92 = sphi 0, %s91
    %s106 = sphi 0, %s92
    %s110 = sphi 0, %s110
    %s112 = sphi 0, %s110
    %s113 = sphi 0, %s112
    %s127 = sphi 0, %s113
    %s131 = sphi 0, %s131
    %s133 = sphi 0, %s131
    %s134 = sphi 0, %s133
    %s148 = sphi 0, %s134
    %s152 = sphi 0, %s152
    %s154 = sphi 0, %s152
    %s155 = sphi 0, %s154
    %s169 = sphi 0, %s155
    %s175 = sphi 0, %s177
    %s178 = sphi 0, %s175
    %s179 = sphi 0, %s178
    %s195 = sphi 0, %s179
  $region4: #{dense_block_forward.2} parent=0 // loop_header_branch
    %16 = sbr.rel (%p14) target = $region8
  $region5: #{dense_block_forward.2} parent=0 // loop_body
    %s18 = ssub.s32 %s13, 1
    %s19 = ssub.s32 %s13, 2
    %s20 = sadd.s32 %s13, 1
    %s21 = ssub.s32 %s13, %s20
    %p22 = scmp.eq.s32.totalorder %s21, 0
    %s24 = sadd.s32 %s23, 1
    %s25 = scalar_select %p22, %s23, %s24
    %p28 = pneg %p22
    %p29 = scmp.eq.s32.totalorder %s13, 1
    %p30 = por %p28, %p29
    %p31 = scmp.ne.s32.totalorder %s23, %s26
    %p32 = scmp.eq.s32.totalorder %s13, 0
    %p33 = por %p31, %p32
    %p34 = scmp.ne.s32.totalorder %s23, %s26
    %p35 = scmp.eq.s32.totalorder %s18, 1
    %p36 = por %p34, %p35
    %p37 = scmp.ne.s32.totalorder %s26, %s27
    %p38 = scmp.eq.s32.totalorder %s18, 0
    %p39 = por %p37, %p38
    %p40 = scmp.ne.s32.totalorder %s26, %s27
    %p41 = scmp.eq.s32.totalorder %s19, 1
    %p42 = por %p40, %p41
    %p44 = scmp.ne.s32.totalorder %s27, %s43
    %p45 = scmp.eq.s32.totalorder %s19, 0
    %p46 = por %p44, %p45
    %s48 = sadd.s32 %s47, 1
    %p51 = scmp.eq.s32.totalorder %s13, 1
    %p52 = scmp.ne.s32.totalorder %s47, %s49
    %p53 = scmp.eq.s32.totalorder %s13, 0
    %p54 = por %p52, %p53
    %p55 = scmp.ne.s32.totalorder %s47, %s49
    %p56 = scmp.eq.s32.totalorder %s18, 1
    %p57 = por %p55, %p56
    %p58 = scmp.ne.s32.totalorder %s49, %s50
    %p59 = scmp.eq.s32.totalorder %s18, 0
    %p60 = por %p58, %p59
    %p61 = scmp.ne.s32.totalorder %s49, %s50
    %p62 = scmp.eq.s32.totalorder %s19, 1
    %p63 = por %p61, %p62
    %p65 = scmp.ne.s32.totalorder %s50, %s64
    %p66 = scmp.eq.s32.totalorder %s19, 0
    %p67 = por %p65, %p66
    %s69 = sadd.s32 %s68, 1
    %p72 = scmp.eq.s32.totalorder %s13, 1
    %p73 = scmp.ne.s32.totalorder %s68, %s70
    %p74 = scmp.eq.s32.totalorder %s13, 0
    %p75 = por %p73, %p74
    %p76 = scmp.ne.s32.totalorder %s68, %s70
    %p77 = scmp.eq.s32.totalorder %s18, 1
    %p78 = por %p76, %p77
    %p79 = scmp.ne.s32.totalorder %s70, %s71
    %p80 = scmp.eq.s32.totalorder %s18, 0
    %p81 = por %p79, %p80
    %p82 = scmp.ne.s32.totalorder %s70, %s71
    %p83 = scmp.eq.s32.totalorder %s19, 1
    %p84 = por %p82, %p83
    %p86 = scmp.ne.s32.totalorder %s71, %s85
    %p87 = scmp.eq.s32.totalorder %s19, 0
    %p88 = por %p86, %p87
    %s90 = sadd.s32 %s89, 1
    %p93 = scmp.eq.s32.totalorder %s13, 1
    %p94 = scmp.ne.s32.totalorder %s89, %s91
    %p95 = scmp.eq.s32.totalorder %s13, 0
    %p96 = por %p94, %p95
    %p97 = scmp.ne.s32.totalorder %s89, %s91
    %p98 = scmp.eq.s32.totalorder %s18, 1
    %p99 = por %p97, %p98
    %p100 = scmp.ne.s32.totalorder %s91, %s92
    %p101 = scmp.eq.s32.totalorder %s18, 0
    %p102 = por %p100, %p101
    %p103 = scmp.ne.s32.totalorder %s91, %s92
    %p104 = scmp.eq.s32.totalorder %s19, 1
    %p105 = por %p103, %p104
    %p107 = scmp.ne.s32.totalorder %s92, %s106
    %p108 = scmp.eq.s32.totalorder %s19, 0
    %p109 = por %p107, %p108
    %s111 = sadd.s32 %s110, 1
    %p114 = scmp.eq.s32.totalorder %s13, 1
    %p115 = scmp.ne.s32.totalorder %s110, %s112
    %p116 = scmp.eq.s32.totalorder %s13, 0
    %p117 = por %p115, %p116
    %p118 = scmp.ne.s32.totalorder %s110, %s112
    %p119 = scmp.eq.s32.totalorder %s18, 1
    %p120 = por %p118, %p119
    %p121 = scmp.ne.s32.totalorder %s112, %s113
    %p122 = scmp.eq.s32.totalorder %s18, 0
    %p123 = por %p121, %p122
    %p124 = scmp.ne.s32.totalorder %s112, %s113
    %p125 = scmp.eq.s32.totalorder %s19, 1
    %p126 = por %p124, %p125
    %p128 = scmp.ne.s32.totalorder %s113, %s127
    %p129 = scmp.eq.s32.totalorder %s19, 0
    %p130 = por %p128, %p129
    %s132 = sadd.s32 %s131, 1
    %p135 = scmp.eq.s32.totalorder %s13, 1
    %p136 = scmp.ne.s32.totalorder %s131, %s133
    %p137 = scmp.eq.s32.totalorder %s13, 0
    %p138 = por %p136, %p137
    %p139 = scmp.ne.s32.totalorder %s131, %s133
    %p140 = scmp.eq.s32.totalorder %s18, 1
    %p141 = por %p139, %p140
    %p142 = scmp.ne.s32.totalorder %s133, %s134
    %p143 = scmp.eq.s32.totalorder %s18, 0
    %p144 = por %p142, %p143
    %p145 = scmp.ne.s32.totalorder %s133, %s134
    %p146 = scmp.eq.s32.totalorder %s19, 1
    %p147 = por %p145, %p146
    %p149 = scmp.ne.s32.totalorder %s134, %s148
    %p150 = scmp.eq.s32.totalorder %s19, 0
    %p151 = por %p149, %p150
    %s153 = sadd.s32 %s152, 1
    %p156 = scmp.eq.s32.totalorder %s13, 1
    %p157 = scmp.ne.s32.totalorder %s152, %s154
    %p158 = scmp.eq.s32.totalorder %s13, 0
    %p159 = por %p157, %p158
    %p160 = scmp.ne.s32.totalorder %s152, %s154
    %p161 = scmp.eq.s32.totalorder %s18, 1
    %p162 = por %p160, %p161
    %p163 = scmp.ne.s32.totalorder %s154, %s155
    %p164 = scmp.eq.s32.totalorder %s18, 0
    %p165 = por %p163, %p164
    %p166 = scmp.ne.s32.totalorder %s154, %s155
    %p167 = scmp.eq.s32.totalorder %s19, 1
    %p168 = por %p166, %p167
    %p170 = scmp.ne.s32.totalorder %s155, %s169
    %p171 = scmp.eq.s32.totalorder %s19, 0
    %p172 = por %p170, %p171
    %s173 = ssub.s32 %s13, %s20
    %p174 = scmp.eq.s32.totalorder %s173, 0
    %s176 = sadd.s32 %s175, 1
    %s177 = scalar_select %p174, %s175, %s176
    %p180 = pneg %p174
    %p181 = scmp.eq.s32.totalorder %s13, 1
    %p182 = por %p180, %p181
    %p183 = scmp.ne.s32.totalorder %s175, %s178
    %p184 = scmp.eq.s32.totalorder %s13, 0
    %p185 = por %p183, %p184
    %p186 = scmp.ne.s32.totalorder %s175, %s178
    %p187 = scmp.eq.s32.totalorder %s18, 1
    %p188 = por %p186, %p187
    %p189 = scmp.ne.s32.totalorder %s178, %s179
    %p190 = scmp.eq.s32.totalorder %s18, 0
    %p191 = por %p189, %p190
    %p192 = scmp.ne.s32.totalorder %s178, %s179
    %p193 = scmp.eq.s32.totalorder %s19, 1
    %p194 = por %p192, %p193
    %p196 = scmp.ne.s32.totalorder %s179, %s195
    %p197 = scmp.eq.s32.totalorder %s19, 0
    %p198 = por %p196, %p197
    %p199 = scmp.le.s32.totalorder 1, %s13
    %p200 = scmp.lt.s32.totalorder %s13, 3
    %p201 = pnand %p199, %p200
    %p202 = pneg %p201
    // Predicated region
    $region9: #{dense_block_forward.2} parent=5 // pred_check
      _
    $region10: #{dense_block_forward.2} parent=5 // pred_check_branch
      %204 = sbr.rel (%p201) target = $region12
    $region11: #{dense_block_forward.2} parent=5 // pred_region
      %s205 = ssub.s32 %s13, 1
      // Predicated region
      $region13: #{dense_block_forward.2} parent=11 // pred_check
        %p206 = pneg %p60
      $region14: #{dense_block_forward.2} parent=11 // pred_check_branch
        %208 = sbr.rel (%p206) target = $region16
      $region15: #{dense_block_forward.2} parent=11 // pred_region
        _
      $region16: #{dense_block_forward.2} parent=11 // pred_fallthru
        _
      // Predicated region
      $region17: #{dense_block_forward.2} parent=11 // pred_check
        %p209 = pneg %p81
      $region18: #{dense_block_forward.2} parent=11 // pred_check_branch
        %211 = sbr.rel (%p209) target = $region20
      $region19: #{dense_block_forward.2} parent=11 // pred_region
        _
      $region20: #{dense_block_forward.2} parent=11 // pred_fallthru
        _
      // Predicated region
      $region21: #{dense_block_forward.2} parent=11 // pred_check
        %p212 = pneg %p102
      $region22: #{dense_block_forward.2} parent=11 // pred_check_branch
        %214 = sbr.rel (%p212) target = $region24
      $region23: #{dense_block_forward.2} parent=11 // pred_region
        _
      $region24: #{dense_block_forward.2} parent=11 // pred_fallthru
        _
      // Predicated region
      $region25: #{dense_block_forward.2} parent=11 // pred_check
        %p215 = pneg %p123
      $region26: #{dense_block_forward.2} parent=11 // pred_check_branch
        %217 = sbr.rel (%p215) target = $region28
      $region27: #{dense_block_forward.2} parent=11 // pred_region
        _
      $region28: #{dense_block_forward.2} parent=11 // pred_fallthru
        _
      // Predicated region
      $region29: #{dense_block_forward.2} parent=11 // pred_check
        %p218 = pneg %p144
      $region30: #{dense_block_forward.2} parent=11 // pred_check_branch
        %220 = sbr.rel (%p218) target = $region32
      $region31: #{dense_block_forward.2} parent=11 // pred_region
        _
      $region32: #{dense_block_forward.2} parent=11 // pred_fallthru
        _
      // Predicated region
      $region33: #{dense_block_forward.2} parent=11 // pred_check
        %p221 = pneg %p165
      $region34: #{dense_block_forward.2} parent=11 // pred_check_branch
        %223 = sbr.rel (%p221) target = $region36
      $region35: #{dense_block_forward.2} parent=11 // pred_region
        _
      $region36: #{dense_block_forward.2} parent=11 // pred_fallthru
        _
    $region12: #{dense_block_forward.2} parent=5 // pred_fallthru
      _
    %p224 = scmp.lt.s32.totalorder %s13, 2
    // Predicated region
    $region37: #{dense_block_forward.2} parent=5 // pred_check
      %p225 = pneg %p224
    $region38: #{dense_block_forward.2} parent=5 // pred_check_branch
      %227 = sbr.rel (%p225) target = $region40
    $region39: #{dense_block_forward.2} parent=5 // pred_region
      // Predicated region
      $region41: #{dense_block_forward.2} parent=39 // pred_check
        %p228 = pneg %p33
      $region42: #{dense_block_forward.2} parent=39 // pred_check_branch
        %230 = sbr.rel (%p228) target = $region44
      $region43: #{dense_block_forward.2} parent=39 // pred_region
        %p231 = scmp.lt.s32.totalorder %s13, 1
        %s232 = scalar_select %p231, %s13, 1
        %s233 = smul.addr %s232, 2
        %s234 = smul.addr %s233, 8
        %s235 = scalar_lea.vmem %s0, %s234
      $region44: #{dense_block_forward.2} parent=39 // pred_fallthru
        _
    $region40: #{dense_block_forward.2} parent=5 // pred_fallthru
      _
    %p236 = scmp.le.s32.totalorder 1, %s13
    %p237 = scmp.lt.s32.totalorder %s13, 3
    %p238 = pnand %p236, %p237
    %p239 = pneg %p238
    // Predicated region
    $region45: #{dense_block_forward.2} parent=5 // pred_check
      _
    $region46: #{dense_block_forward.2} parent=5 // pred_check_branch
      %241 = sbr.rel (%p238) target = $region48
    $region47: #{dense_block_forward.2} parent=5 // pred_region
      %s242 = ssub.s32 %s13, 1
      %p243 = scmp.lt.s32.totalorder %s18, 1
      %s244 = scalar_select %p243, %s18, 1
      %s245 = smul.addr %s244, 2
      %s246 = smul.addr %s245, 8
      %s247 = scalar_lea.vmem %s0, %s246
      %p248 = pneg %p39
      %p249 = pneg %p36
      %p250 = pneg %p60
      %p251 = pneg %p57
      %p252 = pneg %p81
      %p253 = pneg %p78
      %p254 = pneg %p102
      %p255 = pneg %p99
      %p256 = pneg %p123
      %p257 = pneg %p120
      %p258 = pneg %p144
      %p259 = pneg %p141
      %p260 = pneg %p165
      %p261 = pneg %p162
      %p262 = pneg %p191
      %p263 = pneg %p188
      %p264 = scmp.lt.s32.totalorder %s18, 1
      %s265 = scalar_select %p264, %s18, 1
      %s266 = smul.addr %s265, 2
      %s267 = smul.addr %s266, 8
      %s268 = scalar_lea.vmem %s7, %s267
      %p269 = scmp.lt.s32.totalorder %s18, 1
      %s270 = scalar_select %p269, %s18, 1
      %s271 = smul.addr %s270, 2
      %s272 = smul.addr %s271, 8
      %s273 = scalar_lea.vmem %s0, %s272
      %p274 = scmp.lt.s32.totalorder %s18, 1
      %s275 = scalar_select %p274, %s18, 1
      %s276 = smul.addr %s275, 2
      %s277 = smul.addr %s276, 8
      %s278 = scalar_lea.vmem %s7, %s277
      %v279 = vld [vmem:[%s273] sm:$0xff]
      %v280 = vld [vmem:[%s273 + $0x8] sm:$0xff]
      %v281 = vld [vmem:[%s1] sm:$0x1]
      %v283 = vlaneseq
      %v284 = vshrl.u32 %v283, 7
      %v285 = vsub.s32 0, %v284
      %v286 = vrot.slane %v281, %v285
      %v288 = vmul.f32 %v279, %v286
      %v289 = vmul.f32 %v280, %v286
      %v290 = vld [vmem:[%s2] sm:$0x1]
      %v292 = vlaneseq
      %v293 = vshrl.u32 %v292, 7
      %v294 = vsub.s32 0, %v293
      %v295 = vrot.slane %v290, %v294
      %v297 = vadd.f32 %v288, %v295
      %v298 = vadd.f32 %v289, %v295
      %v299 = vmax.f32 %v297, 0.0
      %v300 = vmax.f32 %v298, 0.0
      %vm301 = vcmask 516096
      %302 = vst.msk [vmem:[#allocation2] sm:$0x1] %vm301, 0.0
      %303 = vst.msk [vmem:[#allocation2 + $0x11] sm:$0x1] %vm301, 0.0
      %vm304 = vcmask 523264
      %305 = vst.msk [vmem:[#allocation2 + $0x1] sm:$0xff] %vm304, %v299
      %306 = vst.msk [vmem:[#allocation2 + $0x9] sm:$0xff] %vm304, %v300
      %v307 = vld [vmem:[#allocation2] sm:$0xff]
      %v308 = vld [vmem:[#allocation2 + $0x8] sm:$0xff]
      %v309 = vld [vmem:[%s3] sm:$0xff]
      %v310 = vld [vmem:[%s3 + $0x8] sm:$0xff]
      %v311 = vld [vmem:[%s3 + $0x10] sm:$0xff]
      %v312 = vld [vmem:[%s3 + $0x18] sm:$0xff]
      %v313 = vld [vmem:[%s3 + $0x20] sm:$0xff]
      %v314 = vld [vmem:[%s3 + $0x28] sm:$0xff]
      %v315 = vld [vmem:[%s3 + $0x30] sm:$0xff]
      %v316 = vld [vmem:[%s3 + $0x38] sm:$0xff]
      %v317 = vld [vmem:[#allocation2 + $0x1] sm:$0xff]
      %v318 = vld [vmem:[#allocation2 + $0x9] sm:$0xff]
      %v319 = vld [vmem:[%s4] sm:$0xff]
      %v320 = vld [vmem:[%s4 + $0x8] sm:$0xff]
      %v321 = vld [vmem:[%s4 + $0x10] sm:$0xff]
      %v322 = vld [vmem:[%s4 + $0x18] sm:$0xff]
      %v323 = vld [vmem:[%s4 + $0x20] sm:$0xff]
      %v324 = vld [vmem:[%s4 + $0x28] sm:$0xff]
      %v325 = vld [vmem:[%s4 + $0x30] sm:$0xff]
      %v326 = vld [vmem:[%s4 + $0x38] sm:$0xff]
      %v328 = vsel %vm304, %v317, 0
      %v331 = vsel %vm304, %v318, 0
      %333 = vmatprep.subr.mxu0 0.0
      %334 = vmatpush1.msra.mxu0 %v319
      %335 = vmatprep.subr.mxu0 0.0
      %336 = vmatpush1.msra.mxu0 %v320
      %337 = vmatprep.subr.mxu0 0.0
      %338 = vmatpush1.msra.mxu0 %v321
      %339 = vmatprep.subr.mxu0 0.0
      %340 = vmatpush1.msra.mxu0 %v322
      %341 = vmatprep.subr.mxu0 0.0
      %342 = vmatpush1.msra.mxu0 %v323
      %343 = vmatprep.subr.mxu0 0.0
      %344 = vmatpush1.msra.mxu0 %v324
      %345 = vmatprep.subr.mxu0 0.0
      %346 = vmatpush1.msra.mxu0 %v325
      %347 = vmatprep.subr.mxu0 0.0
      %348 = vmatpush1.msra.mxu0 %v326
      %349 = vmatprep.subr.mxu0 0.0
      %350 = vmatpush1.msra.mxu0 0.0
      %351 = vmatprep.subr.mxu0 0.0
      %352 = vmatpush1.msra.mxu0 0.0
      %353 = vmatprep.subr.mxu0 0.0
      %354 = vmatpush1.msra.mxu0 0.0
      %355 = vmatprep.subr.mxu0 0.0
      %356 = vmatpush1.msra.mxu0 0.0
      %357 = vmatprep.subr.mxu0 0.0
      %358 = vmatpush1.msra.mxu0 0.0
      %359 = vmatprep.subr.mxu0 0.0
      %360 = vmatpush1.msra.mxu0 0.0
      %361 = vmatprep.subr.mxu0 0.0
      %362 = vmatpush1.msra.mxu0 0.0
      %363 = vmatprep.subr.mxu0 0.0
      %364 = vmatpush1.msra.mxu0 0.0
      %365 = vmatprep.subr.mxu0 0.0
      %366 = vmatpush1.msra.mxu0 0.0
      %367 = vmatprep.subr.mxu0 0.0
      %368 = vmatpush1.msra.mxu0 0.0
      %369 = vmatprep.subr.mxu0 0.0
      %370 = vmatpush1.msra.mxu0 0.0
      %371 = vmatprep.subr.mxu0 0.0
      %372 = vmatpush1.msra.mxu0 0.0
      %373 = vmatprep.subr.mxu0 0.0
      %374 = vmatpush1.msra.mxu0 0.0
      %375 = vmatprep.subr.mxu0 0.0
      %376 = vmatpush1.msra.mxu0 0.0
      %377 = vmatprep.subr.mxu0 0.0
      %378 = vmatpush1.msra.mxu0 0.0
      %379 = vmatprep.subr.mxu0 0.0
      %380 = vmatpush1.msra.mxu0 0.0
      %381 = vmatprep.subr.mxu0 0.0
      %382 = vmatpush1.msra.mxu0 0.0
      %383 = vmatprep.subr.mxu0 0.0
      %384 = vmatpush1.msra.mxu0 0.0
      %385 = vmatprep.subr.mxu0 0.0
      %386 = vmatpush1.msra.mxu0 0.0
      %387 = vmatprep.subr.mxu0 0.0
      %388 = vmatpush1.msra.mxu0 0.0
      %389 = vmatprep.subr.mxu0 0.0
      %390 = vmatpush1.msra.mxu0 0.0
      %391 = vmatprep.subr.mxu0 0.0
      %392 = vmatpush1.msra.mxu0 0.0
      %393 = vmatprep.subr.mxu0 0.0
      %394 = vmatpush1.msra.mxu0 0.0
      %395 = vmatprep.subr.mxu0 0.0
      %396 = vmatpush1.msra.mxu0 0.0
      %397 = vmatprep.mubr.f32.mxu0 0.0
      %398 = vmatmul.mubr.f32.gmra.mrb[0].mxu0 %v328
      %v399 = vpop.f32.mrb[0].mxu0
      %v400 = vadd.f32 0.0, %v399
      %v401 = vpop.f32.mrb[0].mxu0
      %402 = vmatprep.mubr.f32.mxu0 0.0
      %403 = vmatmul.mubr.f32.gmra.mrb[0].mxu0 %v331
      %v404 = vpop.f32.mrb[0].mxu0
      %v405 = vadd.f32 0.0, %v404
      %v406 = vpop.f32.mrb[0].mxu0
      %407 = vdwg.mxu0
      %v409 = vsel %vm304, %v307, 0
      %v412 = vsel %vm304, %v308, 0
      %414 = vmatprep.subr.mxu0 0.0
      %415 = vmatpush1.msra.mxu0 %v309
      %416 = vmatprep.subr.mxu0 0.0
      %417 = vmatpush1.msra.mxu0 %v310
      %418 = vmatprep.subr.mxu0 0.0
      %419 = vmatpush1.msra.mxu0 %v311
      %420 = vmatprep.subr.mxu0 0.0
      %421 = vmatpush1.msra.mxu0 %v312
      %422 = vmatprep.subr.mxu0 0.0
      %423 = vmatpush1.msra.mxu0 %v313
      %424 = vmatprep.subr.mxu0 0.0
      %425 = vmatpush1.msra.mxu0 %v314
      %426 = vmatprep.subr.mxu0 0.0
      %427 = vmatpush1.msra.mxu0 %v315
      %428 = vmatprep.subr.mxu0 0.0
      %429 = vmatpush1.msra.mxu0 %v316
      %430 = vmatprep.subr.mxu0 0.0
      %431 = vmatpush1.msra.mxu0 0.0
      %432 = vmatprep.subr.mxu0 0.0
      %433 = vmatpush1.msra.mxu0 0.0
      %434 = vmatprep.subr.mxu0 0.0
      %435 = vmatpush1.msra.mxu0 0.0
      %436 = vmatprep.subr.mxu0 0.0
      %437 = vmatpush1.msra.mxu0 0.0
      %438 = vmatprep.subr.mxu0 0.0
      %439 = vmatpush1.msra.mxu0 0.0
      %440 = vmatprep.subr.mxu0 0.0
      %441 = vmatpush1.msra.mxu0 0.0
      %442 = vmatprep.subr.mxu0 0.0
      %443 = vmatpush1.msra.mxu0 0.0
      %444 = vmatprep.subr.mxu0 0.0
      %445 = vmatpush1.msra.mxu0 0.0
      %446 = vmatprep.subr.mxu0 0.0
      %447 = vmatpush1.msra.mxu0 0.0
      %448 = vmatprep.subr.mxu0 0.0
      %449 = vmatpush1.msra.mxu0 0.0
      %450 = vmatprep.subr.mxu0 0.0
      %451 = vmatpush1.msra.mxu0 0.0
      %452 = vmatprep.subr.mxu0 0.0
      %453 = vmatpush1.msra.mxu0 0.0
      %454 = vmatprep.subr.mxu0 0.0
      %455 = vmatpush1.msra.mxu0 0.0
      %456 = vmatprep.subr.mxu0 0.0
      %457 = vmatpush1.msra.mxu0 0.0
      %458 = vmatprep.subr.mxu0 0.0
      %459 = vmatpush1.msra.mxu0 0.0
      %460 = vmatprep.subr.mxu0 0.0
      %461 = vmatpush1.msra.mxu0 0.0
      %462 = vmatprep.subr.mxu0 0.0
      %463 = vmatpush1.msra.mxu0 0.0
      %464 = vmatprep.subr.mxu0 0.0
      %465 = vmatpush1.msra.mxu0 0.0
      %466 = vmatprep.subr.mxu0 0.0
      %467 = vmatpush1.msra.mxu0 0.0
      %468 = vmatprep.subr.mxu0 0.0
      %469 = vmatpush1.msra.mxu0 0.0
      %470 = vmatprep.subr.mxu0 0.0
      %471 = vmatpush1.msra.mxu0 0.0
      %472 = vmatprep.subr.mxu0 0.0
      %473 = vmatpush1.msra.mxu0 0.0
      %474 = vmatprep.subr.mxu0 0.0
      %475 = vmatpush1.msra.mxu0 0.0
      %476 = vmatprep.subr.mxu0 0.0
      %477 = vmatpush1.msra.mxu0 0.0
      %478 = vmatprep.mubr.f32.mxu0 0.0
      %479 = vmatmul.mubr.f32.gmra.mrb[0].mxu0 %v409
      %v480 = vpop.f32.mrb[0].mxu0
      %v481 = vadd.f32 %v400, %v480
      %v482 = vpop.f32.mrb[0].mxu0
      %483 = vmatprep.mubr.f32.mxu0 0.0
      %484 = vmatmul.mubr.f32.gmra.mrb[0].mxu0 %v412
      %v485 = vpop.f32.mrb[0].mxu0
      %v486 = vadd.f32 %v405, %v485
      %v487 = vpop.f32.mrb[0].mxu0
      %488 = vdwg.mxu0
      %v489 = vld [vmem:[#allocation2 + $0x2] sm:$0xff]
      %v490 = vld [vmem:[#allocation2 + $0xa] sm:$0xff]
      %v491 = vld [vmem:[%s5] sm:$0xff]
      %v492 = vld [vmem:[%s5 + $0x8] sm:$0xff]
      %v493 = vld [vmem:[%s5 + $0x10] sm:$0xff]
      %v494 = vld [vmem:[%s5 + $0x18] sm:$0xff]
      %v495 = vld [vmem:[%s5 + $0x20] sm:$0xff]
      %v496 = vld [vmem:[%s5 + $0x28] sm:$0xff]
      %v497 = vld [vmem:[%s5 + $0x30] sm:$0xff]
      %v498 = vld [vmem:[%s5 + $0x38] sm:$0xff]
      %v500 = vsel %vm304, %v489, 0
      %v503 = vsel %vm304, %v490, 0
      %505 = vmatprep.subr.mxu0 0.0
      %506 = vmatpush1.msra.mxu0 %v491
      %507 = vmatprep.subr.mxu0 0.0
      %508 = vmatpush1.msra.mxu0 %v492
      %509 = vmatprep.subr.mxu0 0.0
      %510 = vmatpush1.msra.mxu0 %v493
      %511 = vmatprep.subr.mxu0 0.0
      %512 = vmatpush1.msra.mxu0 %v494
      %513 = vmatprep.subr.mxu0 0.0
      %514 = vmatpush1.msra.mxu0 %v495
      %515 = vmatprep.subr.mxu0 0.0
      %516 = vmatpush1.msra.mxu0 %v496
      %517 = vmatprep.subr.mxu0 0.0
      %518 = vmatpush1.msra.mxu0 %v497
      %519 = vmatprep.subr.mxu0 0.0
      %520 = vmatpush1.msra.mxu0 %v498
      %521 = vmatprep.subr.mxu0 0.0
      %522 = vmatpush1.msra.mxu0 0.0
      %523 = vmatprep.subr.mxu0 0.0
      %524 = vmatpush1.msra.mxu0 0.0
      %525 = vmatprep.subr.mxu0 0.0
      %526 = vmatpush1.msra.mxu0 0.0
      %527 = vmatprep.subr.mxu0 0.0
      %528 = vmatpush1.msra.mxu0 0.0
      %529 = vmatprep.subr.mxu0 0.0
      %530 = vmatpush1.msra.mxu0 0.0
      %531 = vmatprep.subr.mxu0 0.0
      %532 = vmatpush1.msra.mxu0 0.0
      %533 = vmatprep.subr.mxu0 0.0
      %534 = vmatpush1.msra.mxu0 0.0
      %535 = vmatprep.subr.mxu0 0.0
      %536 = vmatpush1.msra.mxu0 0.0
      %537 = vmatprep.subr.mxu0 0.0
      %538 = vmatpush1.msra.mxu0 0.0
      %539 = vmatprep.subr.mxu0 0.0
      %540 = vmatpush1.msra.mxu0 0.0
      %541 = vmatprep.subr.mxu0 0.0
      %542 = vmatpush1.msra.mxu0 0.0
      %543 = vmatprep.subr.mxu0 0.0
      %544 = vmatpush1.msra.mxu0 0.0
      %545 = vmatprep.subr.mxu0 0.0
      %546 = vmatpush1.msra.mxu0 0.0
      %547 = vmatprep.subr.mxu0 0.0
      %548 = vmatpush1.msra.mxu0 0.0
      %549 = vmatprep.subr.mxu0 0.0
      %550 = vmatpush1.msra.mxu0 0.0
      %551 = vmatprep.subr.mxu0 0.0
      %552 = vmatpush1.msra.mxu0 0.0
      %553 = vmatprep.subr.mxu0 0.0
      %554 = vmatpush1.msra.mxu0 0.0
      %555 = vmatprep.subr.mxu0 0.0
      %556 = vmatpush1.msra.mxu0 0.0
      %557 = vmatprep.subr.mxu0 0.0
      %558 = vmatpush1.msra.mxu0 0.0
      %559 = vmatprep.subr.mxu0 0.0
      %560 = vmatpush1.msra.mxu0 0.0
      %561 = vmatprep.subr.mxu0 0.0
      %562 = vmatpush1.msra.mxu0 0.0
      %563 = vmatprep.subr.mxu0 0.0
      %564 = vmatpush1.msra.mxu0 0.0
      %565 = vmatprep.subr.mxu0 0.0
      %566 = vmatpush1.msra.mxu0 0.0
      %567 = vmatprep.subr.mxu0 0.0
      %568 = vmatpush1.msra.mxu0 0.0
      %569 = vmatprep.mubr.f32.mxu0 0.0
      %570 = vmatmul.mubr.f32.gmra.mrb[0].mxu0 %v500
      %v571 = vpop.f32.mrb[0].mxu0
      %v572 = vadd.f32 0.0, %v571
      %v573 = vpop.f32.mrb[0].mxu0
      %574 = vmatprep.mubr.f32.mxu0 0.0
      %575 = vmatmul.mubr.f32.gmra.mrb[0].mxu0 %v503
      %v576 = vpop.f32.mrb[0].mxu0
      %v577 = vadd.f32 0.0, %v576
      %v578 = vpop.f32.mrb[0].mxu0
      %579 = vdwg.mxu0
      %v580 = vadd.f32 %v481, %v572
      %v581 = vadd.f32 %v486, %v577
      %v582 = vld [vmem:[%s6] sm:$0x1]
      %v584 = vlaneseq
      %v585 = vshrl.u32 %v584, 7
      %v586 = vsub.s32 0, %v585
      %v587 = vrot.slane %v582, %v586
      %v589 = vadd.f32 %v580, %v587
      %v590 = vadd.f32 %v581, %v587
      %591 = vst.msk [vmem:[%s278] sm:$0xff] %vm304, %v589
      %592 = vst.msk [vmem:[%s278 + $0x8] sm:$0xff] %vm304, %v590
      %p593 = scmp.lt.s32.totalorder %s18, 1
      %s594 = scalar_select %p593, %s18, 1
      %s595 = smul.addr %s594, 2
      %s596 = smul.addr %s595, 8
      %s597 = scalar_lea.vmem %s7, %s596
      // Predicated region
      $region49: #{dense_block_forward.2} parent=47 // pred_check
        %p598 = pneg %p188
      $region50: #{dense_block_forward.2} parent=47 // pred_check_branch
        %600 = sbr.rel (%p598) target = $region52
      $region51: #{dense_block_forward.2} parent=47 // pred_region
        _
      $region52: #{dense_block_forward.2} parent=47 // pred_fallthru
        _
    $region48: #{dense_block_forward.2} parent=5 // pred_fallthru
      _
    %p601 = scmp.le.s32.totalorder 2, %s13
    // Predicated region
    $region53: #{dense_block_forward.2} parent=5 // pred_check
      %p602 = pneg %p601
    $region54: #{dense_block_forward.2} parent=5 // pred_check_branch
      %604 = sbr.rel (%p602) target = $region56
    $region55: #{dense_block_forward.2} parent=5 // pred_region
      %s605 = ssub.s32 %s13, 2
      // Predicated region
      $region57: #{dense_block_forward.2} parent=55 // pred_check
        %p606 = pneg %p194
      $region58: #{dense_block_forward.2} parent=55 // pred_check_branch
        %608 = sbr.rel (%p606) target = $region60
      $region59: #{dense_block_forward.2} parent=55 // pred_region
        %p609 = scmp.lt.s32.totalorder %s19, 1
        %s610 = scalar_select %p609, %s19, 1
        %s611 = smul.addr %s610, 2
        %s612 = smul.addr %s611, 8
        %s613 = scalar_lea.vmem %s7, %s612
      $region60: #{dense_block_forward.2} parent=55 // pred_fallthru
        _
    $region56: #{dense_block_forward.2} parent=5 // pred_fallthru
      _
  $region6: #{dense_block_forward.2} parent=0 // loop_footer
    %s17 = sadd.s32 1, %s13
  $region7: #{dense_block_forward.2} parent=0 // loop_footer_branch
    %12 = sbr.rel target = $region3
  $region8: #{dense_block_forward.2} parent=0 // loop_exit
    _

// kernel: dense_block_forward.3
$region0: #{dense_block_forward.3}
  #allocation0 [shape = 'u32[]', space=smem, size = 0x4, offset = 0x4, fixed_abs, tag = 'smem constant byte address 0x4 - core index']
  #allocation1 [shape = 'u32[144,128]{1,0:T(1,128)}', space=vmem, size = 0x12000, scoped, tag = 'internal scratch']
  #allocation2 [shape = 'f32[18,128]{1,0:T(8,128)}', space=vmem, size = 0x3000, scoped, tag = 'scratch operand']
  %s0 = inlined_call_operand.vmem [shape: f32[2,16,128], index: 0, kind: input, shape index: {}]
  %s1 = inlined_call_operand.vmem [shape: f32[1,128], index: 1, kind: input, shape index: {}]
  %s2 = inlined_call_operand.vmem [shape: f32[1,128], index: 2, kind: input, shape index: {}]
  %s3 = inlined_call_operand.vmem [shape: f32[128,64], index: 3, kind: input, shape index: {}]
  %s4 = inlined_call_operand.vmem [shape: f32[128,64], index: 4, kind: input, shape index: {}]
  %s5 = inlined_call_operand.vmem [shape: f32[128,64], index: 5, kind: input, shape index: {}]
  %s6 = inlined_call_operand.vmem [shape: f32[1,64], index: 6, kind: input, shape index: {}]
  %s7 = inlined_call_operand.vmem [shape: f32[2,16,64], index: 7, kind: output, shape index: {}]
  %s8 = sld [smem:[#allocation0]]
  $region61: #{dense_block_forward.3} parent=0
    _
  %s10 = ssub.s32 1, %s8
  %s11 = scalar_select 0, %s10, %s8
  loop: start=0, step=1, limit=4
  $region2: #{dense_block_forward.3} parent=0 // loop_pre_header
    _
  $region3: #{dense_block_forward.3} parent=0 // loop_header
    %s13 = sphi 0, %s17
    %p14 = scmp.ge.s32.totalorder %s13, 4
    %s23 = sphi 0, %s25
    %s26 = sphi 0, %s23
    %s27 = sphi 0, %s26
    %s43 = sphi 0, %s27
    %s47 = sphi 0, %s47
    %s49 = sphi 0, %s47
    %s50 = sphi 0, %s49
    %s64 = sphi 0, %s50
    %s68 = sphi 0, %s68
    %s70 = sphi 0, %s68
    %s71 = sphi 0, %s70
    %s85 = sphi 0, %s71
    %s89 = sphi 0, %s89
    %s91 = sphi 0, %s89
    %s92 = sphi 0, %s91
    %s106 = sphi 0, %s92
    %s110 = sphi 0, %s110
    %s112 = sphi 0, %s110
    %s113 = sphi 0, %s112
    %s127 = sphi 0, %s113
    %s131 = sphi 0, %s131
    %s133 = sphi 0, %s131
    %s134 = sphi 0, %s133
    %s148 = sphi 0, %s134
    %s152 = sphi 0, %s152
    %s154 = sphi 0, %s152
    %s155 = sphi 0, %s154
    %s169 = sphi 0, %s155
    %s175 = sphi 0, %s177
    %s178 = sphi 0, %s175
    %s179 = sphi 0, %s178
    %s195 = sphi 0, %s179
  $region4: #{dense_block_forward.3} parent=0 // loop_header_branch
    %16 = sbr.rel (%p14) target = $region8
  $region5: #{dense_block_forward.3} parent=0 // loop_body
    %s18 = ssub.s32 %s13, 1
    %s19 = ssub.s32 %s13, 2
    %s20 = sadd.s32 %s13, 1
    %s21 = ssub.s32 %s13, %s20
    %p22 = scmp.eq.s32.totalorder %s21, 0
    %s24 = sadd.s32 %s23, 1
    %s25 = scalar_select %p22, %s23, %s24
    %p28 = pneg %p22
    %p29 = scmp.eq.s32.totalorder %s13, 1
    %p30 = por %p28, %p29
    %p31 = scmp.ne.s32.totalorder %s23, %s26
    %p32 = scmp.eq.s32.totalorder %s13, 0
    %p33 = por %p31, %p32
    %p34 = scmp.ne.s32.totalorder %s23, %s26
    %p35 = scmp.eq.s32.totalorder %s18, 1
    %p36 = por %p34, %p35
    %p37 = scmp.ne.s32.totalorder %s26, %s27
    %p38 = scmp.eq.s32.totalorder %s18, 0
    %p39 = por %p37, %p38
    %p40 = scmp.ne.s32.totalorder %s26, %s27
    %p41 = scmp.eq.s32.totalorder %s19, 1
    %p42 = por %p40, %p41
    %p44 = scmp.ne.s32.totalorder %s27, %s43
    %p45 = scmp.eq.s32.totalorder %s19, 0
    %p46 = por %p44, %p45
    %s48 = sadd.s32 %s47, 1
    %p51 = scmp.eq.s32.totalorder %s13, 1
    %p52 = scmp.ne.s32.totalorder %s47, %s49
    %p53 = scmp.eq.s32.totalorder %s13, 0
    %p54 = por %p52, %p53
    %p55 = scmp.ne.s32.totalorder %s47, %s49
    %p56 = scmp.eq.s32.totalorder %s18, 1
    %p57 = por %p55, %p56
    %p58 = scmp.ne.s32.totalorder %s49, %s50
    %p59 = scmp.eq.s32.totalorder %s18, 0
    %p60 = por %p58, %p59
    %p61 = scmp.ne.s32.totalorder %s49, %s50
    %p62 = scmp.eq.s32.totalorder %s19, 1
    %p63 = por %p61, %p62
    %p65 = scmp.ne.s32.totalorder %s50, %s64
    %p66 = scmp.eq.s32.totalorder %s19, 0
    %p67 = por %p65, %p66
    %s69 = sadd.s32 %s68, 1
    %p72 = scmp.eq.s32.totalorder %s13, 1
    %p73 = scmp.ne.s32.totalorder %s68, %s70
    %p74 = scmp.eq.s32.totalorder %s13, 0
    %p75 = por %p73, %p74
    %p76 = scmp.ne.s32.totalorder %s68, %s70
    %p77 = scmp.eq.s32.totalorder %s18, 1
    %p78 = por %p76, %p77
    %p79 = scmp.ne.s32.totalorder %s70, %s71
    %p80 = scmp.eq.s32.totalorder %s18, 0
    %p81 = por %p79, %p80
    %p82 = scmp.ne.s32.totalorder %s70, %s71
    %p83 = scmp.eq.s32.totalorder %s19, 1
    %p84 = por %p82, %p83
    %p86 = scmp.ne.s32.totalorder %s71, %s85
    %p87 = scmp.eq.s32.totalorder %s19, 0
    %p88 = por %p86, %p87
    %s90 = sadd.s32 %s89, 1
    %p93 = scmp.eq.s32.totalorder %s13, 1
    %p94 = scmp.ne.s32.totalorder %s89, %s91
    %p95 = scmp.eq.s32.totalorder %s13, 0
    %p96 = por %p94, %p95
    %p97 = scmp.ne.s32.totalorder %s89, %s91
    %p98 = scmp.eq.s32.totalorder %s18, 1
    %p99 = por %p97, %p98
    %p100 = scmp.ne.s32.totalorder %s91, %s92
    %p101 = scmp.eq.s32.totalorder %s18, 0
    %p102 = por %p100, %p101
    %p103 = scmp.ne.s32.totalorder %s91, %s92
    %p104 = scmp.eq.s32.totalorder %s19, 1
    %p105 = por %p103, %p104
    %p107 = scmp.ne.s32.totalorder %s92, %s106
    %p108 = scmp.eq.s32.totalorder %s19, 0
    %p109 = por %p107, %p108
    %s111 = sadd.s32 %s110, 1
    %p114 = scmp.eq.s32.totalorder %s13, 1
    %p115 = scmp.ne.s32.totalorder %s110, %s112
    %p116 = scmp.eq.s32.totalorder %s13, 0
    %p117 = por %p115, %p116
    %p118 = scmp.ne.s32.totalorder %s110, %s112
    %p119 = scmp.eq.s32.totalorder %s18, 1
    %p120 = por %p118, %p119
    %p121 = scmp.ne.s32.totalorder %s112, %s113
    %p122 = scmp.eq.s32.totalorder %s18, 0
    %p123 = por %p121, %p122
    %p124 = scmp.ne.s32.totalorder %s112, %s113
    %p125 = scmp.eq.s32.totalorder %s19, 1
    %p126 = por %p124, %p125
    %p128 = scmp.ne.s32.totalorder %s113, %s127
    %p129 = scmp.eq.s32.totalorder %s19, 0
    %p130 = por %p128, %p129
    %s132 = sadd.s32 %s131, 1
    %p135 = scmp.eq.s32.totalorder %s13, 1
    %p136 = scmp.ne.s32.totalorder %s131, %s133
    %p137 = scmp.eq.s32.totalorder %s13, 0
    %p138 = por %p136, %p137
    %p139 = scmp.ne.s32.totalorder %s131, %s133
    %p140 = scmp.eq.s32.totalorder %s18, 1
    %p141 = por %p139, %p140
    %p142 = scmp.ne.s32.totalorder %s133, %s134
    %p143 = scmp.eq.s32.totalorder %s18, 0
    %p144 = por %p142, %p143
    %p145 = scmp.ne.s32.totalorder %s133, %s134
    %p146 = scmp.eq.s32.totalorder %s19, 1
    %p147 = por %p145, %p146
    %p149 = scmp.ne.s32.totalorder %s134, %s148
    %p150 = scmp.eq.s32.totalorder %s19, 0
    %p151 = por %p149, %p150
    %s153 = sadd.s32 %s152, 1
    %p156 = scmp.eq.s32.totalorder %s13, 1
    %p157 = scmp.ne.s32.totalorder %s152, %s154
    %p158 = scmp.eq.s32.totalorder %s13, 0
    %p159 = por %p157, %p158
    %p160 = scmp.ne.s32.totalorder %s152, %s154
    %p161 = scmp.eq.s32.totalorder %s18, 1
    %p162 = por %p160, %p161
    %p163 = scmp.ne.s32.totalorder %s154, %s155
    %p164 = scmp.eq.s32.totalorder %s18, 0
    %p165 = por %p163, %p164
    %p166 = scmp.ne.s32.totalorder %s154, %s155
    %p167 = scmp.eq.s32.totalorder %s19, 1
    %p168 = por %p166, %p167
    %p170 = scmp.ne.s32.totalorder %s155, %s169
    %p171 = scmp.eq.s32.totalorder %s19, 0
    %p172 = por %p170, %p171
    %s173 = ssub.s32 %s13, %s20
    %p174 = scmp.eq.s32.totalorder %s173, 0
    %s176 = sadd.s32 %s175, 1
    %s177 = scalar_select %p174, %s175, %s176
    %p180 = pneg %p174
    %p181 = scmp.eq.s32.totalorder %s13, 1
    %p182 = por %p180, %p181
    %p183 = scmp.ne.s32.totalorder %s175, %s178
    %p184 = scmp.eq.s32.totalorder %s13, 0
    %p185 = por %p183, %p184
    %p186 = scmp.ne.s32.totalorder %s175, %s178
    %p187 = scmp.eq.s32.totalorder %s18, 1
    %p188 = por %p186, %p187
    %p189 = scmp.ne.s32.totalorder %s178, %s179
    %p190 = scmp.eq.s32.totalorder %s18, 0
    %p191 = por %p189, %p190
    %p192 = scmp.ne.s32.totalorder %s178, %s179
    %p193 = scmp.eq.s32.totalorder %s19, 1
    %p194 = por %p192, %p193
    %p196 = scmp.ne.s32.totalorder %s179, %s195
    %p197 = scmp.eq.s32.totalorder %s19, 0
    %p198 = por %p196, %p197
    %p199 = scmp.le.s32.totalorder 1, %s13
    %p200 = scmp.lt.s32.totalorder %s13, 3
    %p201 = pnand %p199, %p200
    %p202 = pneg %p201
    // Predicated region
    $region9: #{dense_block_forward.3} parent=5 // pred_check
      _
    $region10: #{dense_block_forward.3} parent=5 // pred_check_branch
      %204 = sbr.rel (%p201) target = $region12
    $region11: #{dense_block_forward.3} parent=5 // pred_region
      %s205 = ssub.s32 %s13, 1
      // Predicated region
      $region13: #{dense_block_forward.3} parent=11 // pred_check
        %p206 = pneg %p60
      $region14: #{dense_block_forward.3} parent=11 // pred_check_branch
        %208 = sbr.rel (%p206) target = $region16
      $region15: #{dense_block_forward.3} parent=11 // pred_region
        _
      $region16: #{dense_block_forward.3} parent=11 // pred_fallthru
        _
      // Predicated region
      $region17: #{dense_block_forward.3} parent=11 // pred_check
        %p209 = pneg %p81
      $region18: #{dense_block_forward.3} parent=11 // pred_check_branch
        %211 = sbr.rel (%p209) target = $region20
      $region19: #{dense_block_forward.3} parent=11 // pred_region
        _
      $region20: #{dense_block_forward.3} parent=11 // pred_fallthru
        _
      // Predicated region
      $region21: #{dense_block_forward.3} parent=11 // pred_check
        %p212 = pneg %p102
      $region22: #{dense_block_forward.3} parent=11 // pred_check_branch
        %214 = sbr.rel (%p212) target = $region24
      $region23: #{dense_block_forward.3} parent=11 // pred_region
        _
      $region24: #{dense_block_forward.3} parent=11 // pred_fallthru
        _
      // Predicated region
      $region25: #{dense_block_forward.3} parent=11 // pred_check
        %p215 = pneg %p123
      $region26: #{dense_block_forward.3} parent=11 // pred_check_branch
        %217 = sbr.rel (%p215) target = $region28
      $region27: #{dense_block_forward.3} parent=11 // pred_region
        _
      $region28: #{dense_block_forward.3} parent=11 // pred_fallthru
        _
      // Predicated region
      $region29: #{dense_block_forward.3} parent=11 // pred_check
        %p218 = pneg %p144
      $region30: #{dense_block_forward.3} parent=11 // pred_check_branch
        %220 = sbr.rel (%p218) target = $region32
      $region31: #{dense_block_forward.3} parent=11 // pred_region
        _
      $region32: #{dense_block_forward.3} parent=11 // pred_fallthru
        _
      // Predicated region
      $region33: #{dense_block_forward.3} parent=11 // pred_check
        %p221 = pneg %p165
      $region34: #{dense_block_forward.3} parent=11 // pred_check_branch
        %223 = sbr.rel (%p221) target = $region36
      $region35: #{dense_block_forward.3} parent=11 // pred_region
        _
      $region36: #{dense_block_forward.3} parent=11 // pred_fallthru
        _
    $region12: #{dense_block_forward.3} parent=5 // pred_fallthru
      _
    %p224 = scmp.lt.s32.totalorder %s13, 2
    // Predicated region
    $region37: #{dense_block_forward.3} parent=5 // pred_check
      %p225 = pneg %p224
    $region38: #{dense_block_forward.3} parent=5 // pred_check_branch
      %227 = sbr.rel (%p225) target = $region40
    $region39: #{dense_block_forward.3} parent=5 // pred_region
      // Predicated region
      $region41: #{dense_block_forward.3} parent=39 // pred_check
        %p228 = pneg %p33
      $region42: #{dense_block_forward.3} parent=39 // pred_check_branch
        %230 = sbr.rel (%p228) target = $region44
      $region43: #{dense_block_forward.3} parent=39 // pred_region
        %p231 = scmp.lt.s32.totalorder %s13, 1
        %s232 = scalar_select %p231, %s13, 1
        %s233 = smul.addr %s232, 2
        %s234 = smul.addr %s233, 8
        %s235 = scalar_lea.vmem %s0, %s234
      $region44: #{dense_block_forward.3} parent=39 // pred_fallthru
        _
    $region40: #{dense_block_forward.3} parent=5 // pred_fallthru
      _
    %p236 = scmp.le.s32.totalorder 1, %s13
    %p237 = scmp.lt.s32.totalorder %s13, 3
    %p238 = pnand %p236, %p237
    %p239 = pneg %p238
    // Predicated region
    $region45: #{dense_block_forward.3} parent=5 // pred_check
      _
    $region46: #{dense_block_forward.3} parent=5 // pred_check_branch
      %241 = sbr.rel (%p238) target = $region48
    $region47: #{dense_block_forward.3} parent=5 // pred_region
      %s242 = ssub.s32 %s13, 1
      %p243 = scmp.lt.s32.totalorder %s18, 1
      %s244 = scalar_select %p243, %s18, 1
      %s245 = smul.addr %s244, 2
      %s246 = smul.addr %s245, 8
      %s247 = scalar_lea.vmem %s0, %s246
      %p248 = pneg %p39
      %p249 = pneg %p36
      %p250 = pneg %p60
      %p251 = pneg %p57
      %p252 = pneg %p81
      %p253 = pneg %p78
      %p254 = pneg %p102
      %p255 = pneg %p99
      %p256 = pneg %p123
      %p257 = pneg %p120
      %p258 = pneg %p144
      %p259 = pneg %p141
      %p260 = pneg %p165
      %p261 = pneg %p162
      %p262 = pneg %p191
      %p263 = pneg %p188
      %p264 = scmp.lt.s32.totalorder %s18, 1
      %s265 = scalar_select %p264, %s18, 1
      %s266 = smul.addr %s265, 2
      %s267 = smul.addr %s266, 8
      %s268 = scalar_lea.vmem %s7, %s267
      %p269 = scmp.lt.s32.totalorder %s18, 1
      %s270 = scalar_select %p269, %s18, 1
      %s271 = smul.addr %s270, 2
      %s272 = smul.addr %s271, 8
      %s273 = scalar_lea.vmem %s0, %s272
      %p274 = scmp.lt.s32.totalorder %s18, 1
      %s275 = scalar_select %p274, %s18, 1
      %s276 = smul.addr %s275, 2
      %s277 = smul.addr %s276, 8
      %s278 = scalar_lea.vmem %s7, %s277
      %v279 = vld [vmem:[%s273] sm:$0xff]
      %v280 = vld [vmem:[%s273 + $0x8] sm:$0xff]
      %v281 = vld [vmem:[%s1] sm:$0x1]
      %v283 = vlaneseq
      %v284 = vshrl.u32 %v283, 7
      %v285 = vsub.s32 0, %v284
      %v286 = vrot.slane %v281, %v285
      %v288 = vmul.f32 %v279, %v286
      %v289 = vmul.f32 %v280, %v286
      %v290 = vld [vmem:[%s2] sm:$0x1]
      %v292 = vlaneseq
      %v293 = vshrl.u32 %v292, 7
      %v294 = vsub.s32 0, %v293
      %v295 = vrot.slane %v290, %v294
      %v297 = vadd.f32 %v288, %v295
      %v298 = vadd.f32 %v289, %v295
      %v299 = vmax.f32 %v297, 0.0
      %v300 = vmax.f32 %v298, 0.0
      %301 = vst [vmem:[#allocation2] sm:$0x1] 0.0
      %302 = vst [vmem:[#allocation2 + $0x11] sm:$0x1] 0.0
      %303 = vst [vmem:[#allocation2 + $0x1] sm:$0xff] %v299
      %304 = vst [vmem:[#allocation2 + $0x9] sm:$0xff] %v300
      %v305 = vld [vmem:[#allocation2] sm:$0xff]
      %v306 = vld [vmem:[#allocation2 + $0x8] sm:$0xff]
      %v307 = vld [vmem:[%s3] sm:$0xff]
      %v308 = vld [vmem:[%s3 + $0x8] sm:$0xff]
      %v309 = vld [vmem:[%s3 + $0x10] sm:$0xff]
      %v310 = vld [vmem:[%s3 + $0x18] sm:$0xff]
      %v311 = vld [vmem:[%s3 + $0x20] sm:$0xff]
      %v312 = vld [vmem:[%s3 + $0x28] sm:$0xff]
      %v313 = vld [vmem:[%s3 + $0x30] sm:$0xff]
      %v314 = vld [vmem:[%s3 + $0x38] sm:$0xff]
      %v315 = vld [vmem:[%s3 + $0x40] sm:$0xff]
      %v316 = vld [vmem:[%s3 + $0x48] sm:$0xff]
      %v317 = vld [vmem:[%s3 + $0x50] sm:$0xff]
      %v318 = vld [vmem:[%s3 + $0x58] sm:$0xff]
      %v319 = vld [vmem:[%s3 + $0x60] sm:$0xff]
      %v320 = vld [vmem:[%s3 + $0x68] sm:$0xff]
      %v321 = vld [vmem:[%s3 + $0x70] sm:$0xff]
      %v322 = vld [vmem:[%s3 + $0x78] sm:$0xff]
      %v323 = vld [vmem:[#allocation2 + $0x1] sm:$0xff]
      %v324 = vld [vmem:[#allocation2 + $0x9] sm:$0xff]
      %v325 = vld [vmem:[%s4] sm:$0xff]
      %v326 = vld [vmem:[%s4 + $0x8] sm:$0xff]
      %v327 = vld [vmem:[%s4 + $0x10] sm:$0xff]
      %v328 = vld [vmem:[%s4 + $0x18] sm:$0xff]
      %v329 = vld [vmem:[%s4 + $0x20] sm:$0xff]
      %v330 = vld [vmem:[%s4 + $0x28] sm:$0xff]
      %v331 = vld [vmem:[%s4 + $0x30] sm:$0xff]
      %v332 = vld [vmem:[%s4 + $0x38] sm:$0xff]
      %v333 = vld [vmem:[%s4 + $0x40] sm:$0xff]
      %v334 = vld [vmem:[%s4 + $0x48] sm:$0xff]
      %v335 = vld [vmem:[%s4 + $0x50] sm:$0xff]
      %v336 = vld [vmem:[%s4 + $0x58] sm:$0xff]
      %v337 = vld [vmem:[%s4 + $0x60] sm:$0xff]
      %v338 = vld [vmem:[%s4 + $0x68] sm:$0xff]
      %v339 = vld [vmem:[%s4 + $0x70] sm:$0xff]
      %v340 = vld [vmem:[%s4 + $0x78] sm:$0xff]
      %341 = vmatprep.subr.mxu0 0.0
      %342 = vmatpush1.msra.mxu0 %v325
      %343 = vmatprep.subr.mxu0 0.0
      %344 = vmatpush1.msra.mxu0 %v326
      %345 = vmatprep.subr.mxu0 0.0
      %346 = vmatpush1.msra.mxu0 %v327
      %347 = vmatprep.subr.mxu0 0.0
      %348 = vmatpush1.msra.mxu0 %v328
      %349 = vmatprep.subr.mxu0 0.0
      %350 = vmatpush1.msra.mxu0 %v329
      %351 = vmatprep.subr.mxu0 0.0
      %352 = vmatpush1.msra.mxu0 %v330
      %353 = vmatprep.subr.mxu0 0.0
      %354 = vmatpush1.msra.mxu0 %v331
      %355 = vmatprep.subr.mxu0 0.0
      %356 = vmatpush1.msra.mxu0 %v332
      %357 = vmatprep.subr.mxu0 0.0
      %358 = vmatpush1.msra.mxu0 %v333
      %359 = vmatprep.subr.mxu0 0.0
      %360 = vmatpush1.msra.mxu0 %v334
      %361 = vmatprep.subr.mxu0 0.0
      %362 = vmatpush1.msra.mxu0 %v335
      %363 = vmatprep.subr.mxu0 0.0
      %364 = vmatpush1.msra.mxu0 %v336
      %365 = vmatprep.subr.mxu0 0.0
      %366 = vmatpush1.msra.mxu0 %v337
      %367 = vmatprep.subr.mxu0 0.0
      %368 = vmatpush1.msra.mxu0 %v338
      %369 = vmatprep.subr.mxu0 0.0
      %370 = vmatpush1.msra.mxu0 %v339
      %371 = vmatprep.subr.mxu0 0.0
      %372 = vmatpush1.msra.mxu0 %v340
      %373 = vmatprep.subr.mxu0 0.0
      %374 = vmatpush1.msra.mxu0 0.0
      %375 = vmatprep.subr.mxu0 0.0
      %376 = vmatpush1.msra.mxu0 0.0
      %377 = vmatprep.subr.mxu0 0.0
      %378 = vmatpush1.msra.mxu0 0.0
      %379 = vmatprep.subr.mxu0 0.0
      %380 = vmatpush1.msra.mxu0 0.0
      %381 = vmatprep.subr.mxu0 0.0
      %382 = vmatpush1.msra.mxu0 0.0
      %383 = vmatprep.subr.mxu0 0.0
      %384 = vmatpush1.msra.mxu0 0.0
      %385 = vmatprep.subr.mxu0 0.0
      %386 = vmatpush1.msra.mxu0 0.0
      %387 = vmatprep.subr.mxu0 0.0
      %388 = vmatpush1.msra.mxu0 0.0
      %389 = vmatprep.subr.mxu0 0.0
      %390 = vmatpush1.msra.mxu0 0.0
      %391 = vmatprep.subr.mxu0 0.0
      %392 = vmatpush1.msra.mxu0 0.0
      %393 = vmatprep.subr.mxu0 0.0
      %394 = vmatpush1.msra.mxu0 0.0
      %395 = vmatprep.subr.mxu0 0.0
      %396 = vmatpush1.msra.mxu0 0.0
      %397 = vmatprep.subr.mxu0 0.0
      %398 = vmatpush1.msra.mxu0 0.0
      %399 = vmatprep.subr.mxu0 0.0
      %400 = vmatpush1.msra.mxu0 0.0
      %401 = vmatprep.subr.mxu0 0.0
      %402 = vmatpush1.msra.mxu0 0.0
      %403 = vmatprep.subr.mxu0 0.0
      %404 = vmatpush1.msra.mxu0 0.0
      %405 = vmatprep.mubr.f32.mxu0 0.0
      %406 = vmatmul.mubr.f32.gmra.mrb[0].mxu0 %v323
      %v407 = vpop.f32.mrb[0].mxu0
      %v408 = vadd.f32 0.0, %v407
      %v409 = vpop.f32.mrb[0].mxu0
      %410 = vmatprep.mubr.f32.mxu0 0.0
      %411 = vmatmul.mubr.f32.gmra.mrb[0].mxu0 %v324
      %v412 = vpop.f32.mrb[0].mxu0
      %v413 = vadd.f32 0.0, %v412
      %v414 = vpop.f32.mrb[0].mxu0
      %415 = vdwg.mxu0
      %416 = vmatprep.subr.mxu0 0.0
      %417 = vmatpush1.msra.mxu0 %v307
      %418 = vmatprep.subr.mxu0 0.0
      %419 = vmatpush1.msra.mxu0 %v308
      %420 = vmatprep.subr.mxu0 0.0
      %421 = vmatpush1.msra.mxu0 %v309
      %422 = vmatprep.subr.mxu0 0.0
      %423 = vmatpush1.msra.mxu0 %v310
      %424 = vmatprep.subr.mxu0 0.0
      %425 = vmatpush1.msra.mxu0 %v311
      %426 = vmatprep.subr.mxu0 0.0
      %427 = vmatpush1.msra.mxu0 %v312
      %428 = vmatprep.subr.mxu0 0.0
      %429 = vmatpush1.msra.mxu0 %v313
      %430 = vmatprep.subr.mxu0 0.0
      %431 = vmatpush1.msra.mxu0 %v314
      %432 = vmatprep.subr.mxu0 0.0
      %433 = vmatpush1.msra.mxu0 %v315
      %434 = vmatprep.subr.mxu0 0.0
      %435 = vmatpush1.msra.mxu0 %v316
      %436 = vmatprep.subr.mxu0 0.0
      %437 = vmatpush1.msra.mxu0 %v317
      %438 = vmatprep.subr.mxu0 0.0
      %439 = vmatpush1.msra.mxu0 %v318
      %440 = vmatprep.subr.mxu0 0.0
      %441 = vmatpush1.msra.mxu0 %v319
      %442 = vmatprep.subr.mxu0 0.0
      %443 = vmatpush1.msra.mxu0 %v320
      %444 = vmatprep.subr.mxu0 0.0
      %445 = vmatpush1.msra.mxu0 %v321
      %446 = vmatprep.subr.mxu0 0.0
      %447 = vmatpush1.msra.mxu0 %v322
      %448 = vmatprep.subr.mxu0 0.0
      %449 = vmatpush1.msra.mxu0 0.0
      %450 = vmatprep.subr.mxu0 0.0
      %451 = vmatpush1.msra.mxu0 0.0
      %452 = vmatprep.subr.mxu0 0.0
      %453 = vmatpush1.msra.mxu0 0.0
      %454 = vmatprep.subr.mxu0 0.0
      %455 = vmatpush1.msra.mxu0 0.0
      %456 = vmatprep.subr.mxu0 0.0
      %457 = vmatpush1.msra.mxu0 0.0
      %458 = vmatprep.subr.mxu0 0.0
      %459 = vmatpush1.msra.mxu0 0.0
      %460 = vmatprep.subr.mxu0 0.0
      %461 = vmatpush1.msra.mxu0 0.0
      %462 = vmatprep.subr.mxu0 0.0
      %463 = vmatpush1.msra.mxu0 0.0
      %464 = vmatprep.subr.mxu0 0.0
      %465 = vmatpush1.msra.mxu0 0.0
      %466 = vmatprep.subr.mxu0 0.0
      %467 = vmatpush1.msra.mxu0 0.0
      %468 = vmatprep.subr.mxu0 0.0
      %469 = vmatpush1.msra.mxu0 0.0
      %470 = vmatprep.subr.mxu0 0.0
      %471 = vmatpush1.msra.mxu0 0.0
      %472 = vmatprep.subr.mxu0 0.0
      %473 = vmatpush1.msra.mxu0 0.0
      %474 = vmatprep.subr.mxu0 0.0
      %475 = vmatpush1.msra.mxu0 0.0
      %476 = vmatprep.subr.mxu0 0.0
      %477 = vmatpush1.msra.mxu0 0.0
      %478 = vmatprep.subr.mxu0 0.0
      %479 = vmatpush1.msra.mxu0 0.0
      %480 = vmatprep.mubr.f32.mxu0 0.0
      %481 = vmatmul.mubr.f32.gmra.mrb[0].mxu0 %v305
      %v482 = vpop.f32.mrb[0].mxu0
      %v483 = vadd.f32 %v408, %v482
      %v484 = vpop.f32.mrb[0].mxu0
      %485 = vmatprep.mubr.f32.mxu0 0.0
      %486 = vmatmul.mubr.f32.gmra.mrb[0].mxu0 %v306
      %v487 = vpop.f32.mrb[0].mxu0
      %v488 = vadd.f32 %v413, %v487
      %v489 = vpop.f32.mrb[0].mxu0
      %490 = vdwg.mxu0
      %v491 = vld [vmem:[#allocation2 + $0x2] sm:$0xff]
      %v492 = vld [vmem:[#allocation2 + $0xa] sm:$0xff]
      %v493 = vld [vmem:[%s5] sm:$0xff]
      %v494 = vld [vmem:[%s5 + $0x8] sm:$0xff]
      %v495 = vld [vmem:[%s5 + $0x10] sm:$0xff]
      %v496 = vld [vmem:[%s5 + $0x18] sm:$0xff]
      %v497 = vld [vmem:[%s5 + $0x20] sm:$0xff]
      %v498 = vld [vmem:[%s5 + $0x28] sm:$0xff]
      %v499 = vld [vmem:[%s5 + $0x30] sm:$0xff]
      %v500 = vld [vmem:[%s5 + $0x38] sm:$0xff]
      %v501 = vld [vmem:[%s5 + $0x40] sm:$0xff]
      %v502 = vld [vmem:[%s5 + $0x48] sm:$0xff]
      %v503 = vld [vmem:[%s5 + $0x50] sm:$0xff]
      %v504 = vld [vmem:[%s5 + $0x58] sm:$0xff]
      %v505 = vld [vmem:[%s5 + $0x60] sm:$0xff]
      %v506 = vld [vmem:[%s5 + $0x68] sm:$0xff]
      %v507 = vld [vmem:[%s5 + $0x70] sm:$0xff]
      %v508 = vld [vmem:[%s5 + $0x78] sm:$0xff]
      %509 = vmatprep.subr.mxu0 0.0
      %510 = vmatpush1.msra.mxu0 %v493
      %511 = vmatprep.subr.mxu0 0.0
      %512 = vmatpush1.msra.mxu0 %v494
      %513 = vmatprep.subr.mxu0 0.0
      %514 = vmatpush1.msra.mxu0 %v495
      %515 = vmatprep.subr.mxu0 0.0
      %516 = vmatpush1.msra.mxu0 %v496
      %517 = vmatprep.subr.mxu0 0.0
      %518 = vmatpush1.msra.mxu0 %v497
      %519 = vmatprep.subr.mxu0 0.0
      %520 = vmatpush1.msra.mxu0 %v498
      %521 = vmatprep.subr.mxu0 0.0
      %522 = vmatpush1.msra.mxu0 %v499
      %523 = vmatprep.subr.mxu0 0.0
      %524 = vmatpush1.msra.mxu0 %v500
      %525 = vmatprep.subr.mxu0 0.0
      %526 = vmatpush1.msra.mxu0 %v501
      %527 = vmatprep.subr.mxu0 0.0
      %528 = vmatpush1.msra.mxu0 %v502
      %529 = vmatprep.subr.mxu0 0.0
      %530 = vmatpush1.msra.mxu0 %v503
      %531 = vmatprep.subr.mxu0 0.0
      %532 = vmatpush1.msra.mxu0 %v504
      %533 = vmatprep.subr.mxu0 0.0
      %534 = vmatpush1.msra.mxu0 %v505
      %535 = vmatprep.subr.mxu0 0.0
      %536 = vmatpush1.msra.mxu0 %v506
      %537 = vmatprep.subr.mxu0 0.0
      %538 = vmatpush1.msra.mxu0 %v507
      %539 = vmatprep.subr.mxu0 0.0
      %540 = vmatpush1.msra.mxu0 %v508
      %541 = vmatprep.subr.mxu0 0.0
      %542 = vmatpush1.msra.mxu0 0.0
      %543 = vmatprep.subr.mxu0 0.0
      %544 = vmatpush1.msra.mxu0 0.0
      %545 = vmatprep.subr.mxu0 0.0
      %546 = vmatpush1.msra.mxu0 0.0
      %547 = vmatprep.subr.mxu0 0.0
      %548 = vmatpush1.msra.mxu0 0.0
      %549 = vmatprep.subr.mxu0 0.0
      %550 = vmatpush1.msra.mxu0 0.0
      %551 = vmatprep.subr.mxu0 0.0
      %552 = vmatpush1.msra.mxu0 0.0
      %553 = vmatprep.subr.mxu0 0.0
      %554 = vmatpush1.msra.mxu0 0.0
      %555 = vmatprep.subr.mxu0 0.0
      %556 = vmatpush1.msra.mxu0 0.0
      %557 = vmatprep.subr.mxu0 0.0
      %558 = vmatpush1.msra.mxu0 0.0
      %559 = vmatprep.subr.mxu0 0.0
      %560 = vmatpush1.msra.mxu0 0.0
      %561 = vmatprep.subr.mxu0 0.0
      %562 = vmatpush1.msra.mxu0 0.0
      %563 = vmatprep.subr.mxu0 0.0
      %564 = vmatpush1.msra.mxu0 0.0
      %565 = vmatprep.subr.mxu0 0.0
      %566 = vmatpush1.msra.mxu0 0.0
      %567 = vmatprep.subr.mxu0 0.0
      %568 = vmatpush1.msra.mxu0 0.0
      %569 = vmatprep.subr.mxu0 0.0
      %570 = vmatpush1.msra.mxu0 0.0
      %571 = vmatprep.subr.mxu0 0.0
      %572 = vmatpush1.msra.mxu0 0.0
      %573 = vmatprep.mubr.f32.mxu0 0.0
      %574 = vmatmul.mubr.f32.gmra.mrb[0].mxu0 %v491
      %v575 = vpop.f32.mrb[0].mxu0
      %v576 = vadd.f32 0.0, %v575
      %v577 = vpop.f32.mrb[0].mxu0
      %578 = vmatprep.mubr.f32.mxu0 0.0
      %579 = vmatmul.mubr.f32.gmra.mrb[0].mxu0 %v492
      %v580 = vpop.f32.mrb[0].mxu0
      %v581 = vadd.f32 0.0, %v580
      %v582 = vpop.f32.mrb[0].mxu0
      %583 = vdwg.mxu0
      %v584 = vadd.f32 %v483, %v576
      %v585 = vadd.f32 %v488, %v581
      %v586 = vld [vmem:[%s6] sm:$0x1]
      %v588 = vlaneseq
      %v589 = vshrl.u32 %v588, 7
      %v590 = vsub.s32 0, %v589
      %v591 = vrot.slane %v586, %v590
      %v593 = vadd.f32 %v584, %v591
      %v594 = vadd.f32 %v585, %v591
      %vm595 = vcmask 523264
      %596 = vst.msk [vmem:[%s278] sm:$0xff] %vm595, %v593
      %597 = vst.msk [vmem:[%s278 + $0x8] sm:$0xff] %vm595, %v594
      %p598 = scmp.lt.s32.totalorder %s18, 1
      %s599 = scalar_select %p598, %s18, 1
      %s600 = smul.addr %s599, 2
      %s601 = smul.addr %s600, 8
      %s602 = scalar_lea.vmem %s7, %s601
      // Predicated region
      $region49: #{dense_block_forward.3} parent=47 // pred_check
        %p603 = pneg %p188
      $region50: #{dense_block_forward.3} parent=47 // pred_check_branch
        %605 = sbr.rel (%p603) target = $region52
      $region51: #{dense_block_forward.3} parent=47 // pred_region
        _
      $region52: #{dense_block_forward.3} parent=47 // pred_fallthru
        _
    $region48: #{dense_block_forward.3} parent=5 // pred_fallthru
      _
    %p606 = scmp.le.s32.totalorder 2, %s13
    // Predicated region
    $region53: #{dense_block_forward.3} parent=5 // pred_check
      %p607 = pneg %p606
    $region54: #{dense_block_forward.3} parent=5 // pred_check_branch
      %609 = sbr.rel (%p607) target = $region56
    $region55: #{dense_block_forward.3} parent=5 // pred_region
      %s610 = ssub.s32 %s13, 2
      // Predicated region
      $region57: #{dense_block_forward.3} parent=55 // pred_check
        %p611 = pneg %p194
      $region58: #{dense_block_forward.3} parent=55 // pred_check_branch
        %613 = sbr.rel (%p611) target = $region60
      $region59: #{dense_block_forward.3} parent=55 // pred_region
        %p614 = scmp.lt.s32.totalorder %s19, 1
        %s615 = scalar_select %p614, %s19, 1
        %s616 = smul.addr %s615, 2
        %s617 = smul.addr %s616, 8
        %s618 = scalar_lea.vmem %s7, %s617
      $region60: #{dense_block_forward.3} parent=55 // pred_fallthru
        _
    $region56: #{dense_block_forward.3} parent=5 // pred_fallthru
      _
  $region6: #{dense_block_forward.3} parent=0 // loop_footer
    %s17 = sadd.s32 1, %s13
  $region7: #{dense_block_forward.3} parent=0 // loop_footer_branch
    %12 = sbr.rel target = $region3
  $region8: #{dense_block_forward.3} parent=0 // loop_exit
    _

</llo_original>
